<compile_context>
chip_gen: v7x
topology: tpu7x:2x2x1
jax: 0.10.0
libtpu: 0.0.40
codegen_flags: <defaults>
</compile_context>

<pallas_src>
import functools

import jax
import jax.numpy as jnp
from jax import lax
from jax.experimental import pallas as pl
from jax.experimental.pallas import tpu as pltpu


# ---------------------------------------------------------------------------
# generation-aware sizing helpers
# ---------------------------------------------------------------------------
def _vmem_capacity_bytes():
    try:
        return int(pltpu.get_tpu_info().vmem_capacity_bytes)
    except Exception:
        return 64 * 1024 * 1024  # conservative (v7x-sized) fallback


_VMEM_CAP = _vmem_capacity_bytes()
# Explicit scoped-VMEM request: well above the 16/32 MiB defaults on v5e/v6e, and
# safely below physical VMEM on every generation (v7x has only 64 MiB per TensorCore).
_VMEM_LIMIT = int(min(96 * 1024 * 1024, _VMEM_CAP * 0.7))
_TILE_BUDGET = _VMEM_LIMIT // 2            # what our own blocks are allowed to use
_ROW_TILE_CAP = 512 if _VMEM_CAP >= 100 * 1024 * 1024 else 256
_DH_TILE_CAP = 512 if _VMEM_CAP >= 100 * 1024 * 1024 else 256


def _row_tile(n, cap):
    """Row tile: full dim if small, otherwise a multiple-of-8 cap.  Non-dividing tails
    are handled by the cdiv grid + Pallas boundary masking (rows are independent)."""
    if n <= cap:
        return n
    return max(8, (cap // 8) * 8)


def _dh_tile(dh, cap):
    """Hidden-dim (contraction) tile for the FFN: must divide Dh exactly (padding on a
    reduction axis would pollute the accumulator) and be a multiple of 128."""
    if dh <= cap:
        return dh
    for t in range(cap - cap % 128, 0, -128):
        if dh % t == 0:
            return t
    return dh  # awkward Dh: keep the full weight resident (original behaviour)


def _q_tile(lq, lk, h, dk, dv, itemsize, budget):
    """Largest q tile whose per-grid-step VMEM footprint fits `budget`."""
    tq = lq if lq <= 256 else 256
    if tq < lq:
        tq = max(8, (tq // 8) * 8)

    def per_step_bytes(t):
        dbl = 2 * (t * h * dk + t * lk + t * h * dv + h * t * lk) * itemsize  # q, mask, ctx, attn
        resident = 2 * lk * h * (dk + dv) * itemsize                          # k, v slabs
        live = (h * t * lk + t * h * dv + 2 * t * lk) * 4                     # f32 intermediates
        return dbl + resident + live

    while tq > 8 and per_step_bytes(tq) > budget:
        tq = max(8, ((tq // 2) // 8) * 8)
    return tq


# ---------------------------------------------------------------------------
# kernel 1: scaled dot-product attention (single additive-mask path)
# ---------------------------------------------------------------------------
def _sdpa_kernel(*refs, H, Dk, Dv, inv_temperature, has_mask):
    if has_mask:
        q_ref, k_ref, v_ref, mask_ref, ctx_ref, attn_ref = refs
    else:
        q_ref, k_ref, v_ref, ctx_ref, attn_ref = refs
        mask_ref = None

    # Temperature folded into the small q tile (tq*H*Dk muls, not tq*Lk*H).
    q = q_ref[...] * inv_temperature          # (tq, H*Dk), native dtype
    k = k_ref[...]                            # (Lk, H*Dk)
    v = v_ref[...]                            # (Lk, H*Dv)
    mask = mask_ref[...].astype(jnp.float32) if has_mask else None   # (tq, Lk) additive

    ctx_parts = []
    for h in range(H):                        # static unroll: block-diagonal head contraction
        q_h = q[:, h * Dk:(h + 1) * Dk]       # (tq, Dk)
        k_h = k[:, h * Dk:(h + 1) * Dk]       # (Lk, Dk)
        v_h = v[:, h * Dv:(h + 1) * Dv]       # (Lk, Dv)

        # q @ k^T contracting the shared last dim; native dtype into MXU, f32 accumulate.
        s = lax.dot_general(q_h, k_h, (((1,), (1,)), ((), ())),
                            preferred_element_type=jnp.float32)       # (tq, Lk)
        if has_mask:
            s = s + mask                      # additive mask (0 / -1e9 for boolean masks)

        # numerically-stable softmax over keys (f32 on every TPU generation).
        # TODO(synk): on v6e/v7x the exp could run in bf16 for ~2x EUP throughput.
        m = jnp.max(s, axis=-1, keepdims=True)
        e = jnp.exp(s - m)
        denom = jnp.sum(e, axis=-1, keepdims=True)
        # exact reciprocal: attn is a returned tensor compared at ~1e-5 tolerance.
        p = e * pl.reciprocal(denom, approx=False)

        # TODO(synk): nn.Dropout(attn_dropout) is identity in eval mode; training-mode
        # dropout would use pltpu.prng_seed + pltpu.stateful_bernoulli here.

        attn_ref[h] = p.astype(attn_ref.dtype)                        # (tq, Lk) per-head store
        ctx_h = lax.dot_general(p.astype(v_h.dtype), v_h, (((1,), (0,)), ((), ())),
                                preferred_element_type=jnp.float32)   # (tq, Dv)
        ctx_parts.append(ctx_h.astype(ctx_ref.dtype))

    # Single lane-dense store of the context tile already in (Lq, H*Dv) layout.
    ctx_ref[...] = jnp.concatenate(ctx_parts, axis=-1)


def scaled_dot_product_attention(q, k, v, add_mask, *, num_heads, d_k, d_v,
                                 temperature, attn_dtype=None):
    """q: (B, Lq, H*Dk), k: (B, Lk, H*Dk), v: (B, Lk, H*Dv) in the head-interleaved
    layout produced by the projection GEMMs (no HBM transposes).
    add_mask: None or (B, Lq, Lk) float32 *additive* mask.
    Returns ctx (B, Lq, H*Dv) and attn (B, H, Lq, Lk)."""
    B, Lq, _ = q.shape
    Lk = k.shape[1]
    H, Dk, Dv = num_heads, d_k, d_v
    attn_dtype = q.dtype if attn_dtype is None else jnp.dtype(attn_dtype)
    itemsize = q.dtype.itemsize

    tq = _q_tile(Lq, Lk, H, Dk, Dv, itemsize, _TILE_BUDGET)
    grid = (B, pl.cdiv(Lq, tq))
    has_mask = add_mask is not None

    in_specs = [
        pl.BlockSpec((None, tq, H * Dk), lambda b, qi: (b, qi, 0)),
        # k/v slabs are resident across the q-tile axis (constant index_map).
        # TODO(synk): pipeline_mode=pl.Buffered(1) would halve their VMEM footprint.
        pl.BlockSpec((None, Lk, H * Dk), lambda b, qi: (b, 0, 0)),
        pl.BlockSpec((None, Lk, H * Dv), lambda b, qi: (b, 0, 0)),
    ]
    inputs = [q, k, v]
    if has_mask:
        # per-batch mask (never broadcast over heads in HBM).
        in_specs.append(pl.BlockSpec((None, tq, Lk), lambda b, qi: (b, qi, 0)))
        inputs.append(add_mask)

    out_shape = (
        jax.ShapeDtypeStruct((B, Lq, H * Dv), q.dtype),      # context, final layout
        jax.ShapeDtypeStruct((B, H, Lq, Lk), attn_dtype),    # attention probs, final layout
    )
    out_specs = [
        pl.BlockSpec((None, tq, H * Dv), lambda b, qi: (b, qi, 0)),
        pl.BlockSpec((None, H, tq, Lk), lambda b, qi: (b, 0, qi, 0)),
    ]

    flops = 2 * B * H * Lq * Lk * (Dk + Dv)
    bytes_accessed = (itemsize * (q.size + k.size + v.size)
                      + (add_mask.size * add_mask.dtype.itemsize if has_mask else 0)
                      + itemsize * B * Lq * H * Dv
                      + attn_dtype.itemsize * B * H * Lq * Lk)
    cost = pl.CostEstimate(flops=int(flops), transcendentals=int(B * H * Lq * Lk),
                           bytes_accessed=int(bytes_accessed))

    kernel = functools.partial(_sdpa_kernel, H=H, Dk=Dk, Dv=Dv,
                               inv_temperature=float(1.0 / temperature),
                               has_mask=has_mask)

    ctx, attn = pl.pallas_call(
        kernel,
        out_shape=out_shape,
        grid_spec=pltpu.PrefetchScalarGridSpec(
            num_scalar_prefetch=0,
            grid=grid,
            in_specs=in_specs,
            out_specs=out_specs,
        ),
        compiler_params=pltpu.CompilerParams(
            dimension_semantics=("parallel", "parallel"),
            vmem_limit_bytes=_VMEM_LIMIT,
        ),
        cost_estimate=cost,
    )(*inputs)
    return ctx, attn


# ---------------------------------------------------------------------------
# kernel 2: output projection + residual + LayerNorm (fused, row-tiled)
# ---------------------------------------------------------------------------
def _proj_residual_ln_kernel(x_ref, res_ref, w_ref, g_ref, b_ref, o_ref, *, eps):
    y = lax.dot_general(x_ref[...], w_ref[...], (((1,), (0,)), ((), ())),
                        preferred_element_type=jnp.float32)
    y = y + res_ref[...].astype(jnp.float32)
    mean = jnp.mean(y, axis=-1, keepdims=True)
    var = jnp.mean(jnp.square(y - mean), axis=-1, keepdims=True)
    y = (y - mean) * lax.rsqrt(var + eps)
    o_ref[...] = (y * g_ref[...] + b_ref[...]).astype(o_ref.dtype)


def proj_residual_layernorm(x, residual, w, gamma, beta, *, eps=1e-6):
    R, Cin = x.shape
    D = w.shape[1]
    tr = _row_tile(R, _ROW_TILE_CAP)
    kernel = functools.partial(_proj_residual_ln_kernel, eps=eps)
    return pl.pallas_call(
        kernel,
        out_shape=jax.ShapeDtypeStruct((R, D), x.dtype),
        grid_spec=pltpu.PrefetchScalarGridSpec(
            num_scalar_prefetch=0,
            grid=(pl.cdiv(R, tr),),
            in_specs=[
                pl.BlockSpec((tr, Cin), lambda r: (r, 0)),
                pl.BlockSpec((tr, D), lambda r: (r, 0)),
                pl.BlockSpec((Cin, D), lambda r: (0, 0)),   # resident weight
                pl.BlockSpec((1, D), lambda r: (0, 0)),
                pl.BlockSpec((1, D), lambda r: (0, 0)),
            ],
            out_specs=pl.BlockSpec((tr, D), lambda r: (r, 0)),
        ),
        compiler_params=pltpu.CompilerParams(
            dimension_semantics=("parallel",),
            vmem_limit_bytes=_VMEM_LIMIT,
        ),
    )(x, residual, w, gamma, beta)


# ---------------------------------------------------------------------------
# kernel 3: position-wise FFN + residual + LayerNorm (row-tiled, hidden-dim tiled)
# ---------------------------------------------------------------------------
def _ffn_residual_ln_kernel(x_ref, w1_ref, b1_ref, w2_ref, b2_ref, g_ref, be_ref,
                            o_ref, acc_ref, *, eps):
    j = pl.program_id(1)

    @pl.when(j == 0)
    def _():
        acc_ref[...] = jnp.zeros_like(acc_ref)

    x = x_ref[...]                                            # (tr, D), resident across j
    h = lax.dot_general(x, w1_ref[...], (((1,), (0,)), ((), ())),
                        preferred_element_type=jnp.float32) + b1_ref[...]
    h = jnp.maximum(h, 0.0)
    acc_ref[...] += lax.dot_general(h.astype(w2_ref.dtype), w2_ref[...],
                                    (((1,), (0,)), ((), ())),
                                    preferred_element_type=jnp.float32)

    @pl.when(j == pl.num_programs(1) - 1)
    def _():
        # TODO(synk): FFN nn.Dropout is identity in eval mode.
        y = acc_ref[...] + b2_ref[...] + x.astype(jnp.float32)
        mean = jnp.mean(y, axis=-1, keepdims=True)
        var = jnp.mean(jnp.square(y - mean), axis=-1, keepdims=True)
        y = (y - mean) * lax.rsqrt(var + eps)
        o_ref[...] = (y * g_ref[...] + be_ref[...]).astype(o_ref.dtype)


def ffn_residual_layernorm(x, w1, b1, w2, b2, gamma, beta, *, eps=1e-6):
    R, D = x.shape
    Dh = w1.shape[1]
    tr = _row_tile(R, _ROW_TILE_CAP)
    tdh = _dh_tile(Dh, _DH_TILE_CAP)
    kernel = functools.partial(_ffn_residual_ln_kernel, eps=eps)
    return pl.pallas_call(
        kernel,
        out_shape=jax.ShapeDtypeStruct((R, D), x.dtype),
        grid_spec=pltpu.PrefetchScalarGridSpec(
            num_scalar_prefetch=0,
            grid=(pl.cdiv(R, tr), Dh // tdh),
            in_specs=[
                pl.BlockSpec((tr, D), lambda r, j: (r, 0)),     # resident across Dh chunks
                pl.BlockSpec((D, tdh), lambda r, j: (0, j)),
                pl.BlockSpec((1, tdh), lambda r, j: (0, j)),
                pl.BlockSpec((tdh, D), lambda r, j: (j, 0)),
                pl.BlockSpec((1, D), lambda r, j: (0, 0)),
                pl.BlockSpec((1, D), lambda r, j: (0, 0)),
                pl.BlockSpec((1, D), lambda r, j: (0, 0)),
            ],
            out_specs=pl.BlockSpec((tr, D), lambda r, j: (r, 0)),
            scratch_shapes=[pltpu.VMEM((tr, D), jnp.float32)],
        ),
        compiler_params=pltpu.CompilerParams(
            dimension_semantics=("parallel", "arbitrary"),
            vmem_limit_bytes=_VMEM_LIMIT,
        ),
    )(x, w1, b1, w2, b2, gamma, beta)


# ---------------------------------------------------------------------------
# full AttentionBlockKVCacheProgressive forward (eval mode)
# ---------------------------------------------------------------------------
def init_attention_block_params(key, feat_dim, hidden_dim, num_heads):
    d_k = d_v = feat_dim // num_heads
    keys = jax.random.split(key, 12)
    s = feat_dim ** -0.5
    sh = hidden_dim ** -0.5
    return {
        "num_heads": num_heads, "d_k": d_k, "d_v": d_v,
        "w_qs": jax.random.normal(keys[0], (feat_dim, num_heads * d_k), jnp.float32) * s,
        "w_ks": jax.random.normal(keys[1], (feat_dim, num_heads * d_k), jnp.float32) * s,
        "w_vs": jax.random.normal(keys[2], (feat_dim, num_heads * d_v), jnp.float32) * s,
        "w_fc": jax.random.normal(keys[3], (num_heads * d_v, feat_dim), jnp.float32) * s,
        "ln1_g": 1.0 + 0.1 * jax.random.normal(keys[4], (1, feat_dim), jnp.float32),
        "ln1_b": 0.1 * jax.random.normal(keys[5], (1, feat_dim), jnp.float32),
        "w1": jax.random.normal(keys[6], (feat_dim, hidden_dim), jnp.float32) * s,
        "b1": 0.1 * jax.random.normal(keys[7], (1, hidden_dim), jnp.float32),
        "w2": jax.random.normal(keys[8], (hidden_dim, feat_dim), jnp.float32) * sh,
        "b2": 0.1 * jax.random.normal(keys[9], (1, feat_dim), jnp.float32),
        "ln2_g": 1.0 + 0.1 * jax.random.normal(keys[10], (1, feat_dim), jnp.float32),
        "ln2_b": 0.1 * jax.random.normal(keys[11], (1, feat_dim), jnp.float32),
    }


def _is_progressive_mask(mask):
    """Mirrors the PyTorch heuristic.  NOTE: this forces a blocking device->host sync;
    hot-path callers should pass mask_mode explicitly instead."""
    if mask is None:
        return False
    return jnp.issubdtype(mask.dtype, jnp.floating) and not bool(
        jnp.all((mask == 0) | (mask == 1)))


def attention_block_forward(params, q, k, v, slf_attn_mask=None, mask_mode=None,
                            attn_dtype=None):
    """Pallas forward of AttentionBlockKVCacheProgressive (eval mode).
    mask_mode: None (auto-detect, host sync), "none", "bool" or "progressive".
    Returns (output (B, Lq, D), attn (B, H, Lq, Lk))."""
    B, Lq, Dm = q.shape
    Lk = k.shape[1]
    H, Dk, Dv = params["num_heads"], params["d_k"], params["d_v"]
    temperature = float(Dk) ** 0.5

    residual = q

    # q/k/v projections stay in the head-interleaved (B, L, H*D) layout: no HBM
    # transpose between the GEMMs and the attention kernel.
    qh = q @ params["w_qs"]
    kh = k @ params["w_ks"]
    vh = v @ params["w_vs"]

    if mask_mode is None:
        if slf_attn_mask is None:
            mask_mode = "none"
        elif _is_progressive_mask(slf_attn_mask):
            mask_mode = "progressive"
        else:
            mask_mode = "bool"

    if mask_mode == "none":
        add_mask = None
    elif mask_mode == "progressive":
        add_mask = jnp.broadcast_to(slf_attn_mask, (B, Lq, Lk)).astype(jnp.float32)
    else:
        # boolean mask -> additive (0 / -1e9) mask, computed once per call; softmax of
        # the masked entries underflows to exactly 0 in both formulations.
        add_mask = jnp.where(jnp.broadcast_to(slf_attn_mask, (B, Lq, Lk)) == 0,
                             jnp.float32(-1e9), jnp.float32(0.0))

    ctx, attn = scaled_dot_product_attention(
        qh, kh, vh, add_mask, num_heads=H, d_k=Dk, d_v=Dv,
        temperature=temperature, attn_dtype=attn_dtype)

    # ctx is already (B, Lq, H*Dv): free reshape, no transpose round-trip.
    x = ctx.reshape(B * Lq, H * Dv)

    # fc projection + residual + LayerNorm (fc dropout is identity in eval mode).
    y = proj_residual_layernorm(x, residual.reshape(B * Lq, Dm), params["w_fc"],
                                params["ln1_g"], params["ln1_b"])

    # position-wise FFN + residual + LayerNorm.
    y = ffn_residual_layernorm(y, params["w1"], params["b1"], params["w2"],
                               params["b2"], params["ln2_g"], params["ln2_b"])

    return y.reshape(B, Lq, Dm), attn


# ---------------------------------------------------------------------------
# pure-JAX reference (same math as the PyTorch module in eval mode)
# ---------------------------------------------------------------------------
def _layer_norm_ref(x, g, b, eps=1e-6):
    mean = jnp.mean(x, axis=-1, keepdims=True)
    var = jnp.mean(jnp.square(x - mean), axis=-1, keepdims=True)
    return (x - mean) / jnp.sqrt(var + eps) * g + b


def _reference_forward(params, q, k, v, slf_attn_mask=None):
    B, Lq, Dm = q.shape
    Lk = k.shape[1]
    H, Dk, Dv = params["num_heads"], params["d_k"], params["d_v"]
    temperature = float(Dk) ** 0.5
    residual = q
    qh = (q @ params["w_qs"]).reshape(B, Lq, H, Dk).transpose(0, 2, 1, 3)
    kh = (k @ params["w_ks"]).reshape(B, Lk, H, Dk).transpose(0, 2, 1, 3)
    vh = (v @ params["w_vs"]).reshape(B, Lk, H, Dv).transpose(0, 2, 1, 3)
    scores = jnp.einsum("bhqd,bhkd->bhqk", qh / temperature, kh)
    if slf_attn_mask is not None:
        m = jnp.broadcast_to(slf_attn_mask, (B, Lq, Lk))[:, None]
        progressive = jnp.issubdtype(slf_attn_mask.dtype, jnp.floating) and not bool(
            jnp.all((slf_attn_mask == 0) | (slf_attn_mask == 1)))
        scores = scores + m if progressive else jnp.where(m == 0, -1e9, scores)
    attn = jax.nn.softmax(scores, axis=-1)
    o = jnp.einsum("bhqk,bhkd->bhqd", attn, vh)
    o = o.transpose(0, 2, 1, 3).reshape(B, Lq, H * Dv)
    o = _layer_norm_ref(o @ params["w_fc"] + residual, params["ln1_g"], params["ln1_b"])
    h = jnp.maximum(o @ params["w1"] + params["b1"], 0.0)
    y = _layer_norm_ref(h @ params["w2"] + params["b2"] + o,
                        params["ln2_g"], params["ln2_b"])
    return y, attn


if __name__ == "__main__":
    B, L = 2, 8
    feat_dim, hidden_dim, num_heads = 32, 64, 4

    root = jax.random.PRNGKey(0)
    kp, kq, kk, kv, km = jax.random.split(root, 5)
    params = init_attention_block_params(kp, feat_dim, hidden_dim, num_heads)

    q = jax.random.normal(kq, (B, L, feat_dim), dtype=jnp.float32)
    k = jax.random.normal(kk, (B, L, feat_dim), dtype=jnp.float32)
    v = jax.random.normal(kv, (B, L, feat_dim), dtype=jnp.float32)

    # boolean (causal) mask -> masked_fill path; progressive float mask -> additive path.
    bool_mask = jnp.broadcast_to(jnp.tril(jnp.ones((L, L), jnp.int32))[None], (B, L, L))
    prog_mask = -0.5 * jax.random.uniform(km, (B, L, L), dtype=jnp.float32)

    cases = (
        ("bool", bool_mask, "bool"),
        ("progressive", prog_mask, "progressive"),
        ("none", None, "none"),
        ("auto-detect", bool_mask, None),   # exercises the PyTorch-style auto probe
    )
    for name, mask, mode in cases:
        out, attn = attention_block_forward(params, q, k, v, mask, mask_mode=mode)
        out = jax.block_until_ready(out)
        attn = jax.block_until_ready(attn)
        ref_out, ref_attn = _reference_forward(params, q, k, v, mask)
        assert jnp.allclose(out, ref_out, atol=2e-5, rtol=2e-5), f"output mismatch ({name})"
        assert jnp.allclose(attn, ref_attn, atol=2e-5, rtol=2e-5), f"attn mismatch ({name})"

    print("KERNEL_OK")
</pallas_src>

<mosaic_0001>
module attributes {stable_mosaic.version = 11 : i64} {
  func.func @_sdpa_kernel(%arg0: i32, %arg1: i32, %arg2: memref<1x8x32xf32, #tpu.memory_space<vmem>>, %arg3: memref<1x8x32xf32, #tpu.memory_space<vmem>>, %arg4: memref<1x8x32xf32, #tpu.memory_space<vmem>>, %arg5: memref<1x8x8xf32, #tpu.memory_space<vmem>>, %arg6: memref<1x8x32xf32, #tpu.memory_space<vmem>>, %arg7: memref<1x4x8x8xf32, #tpu.memory_space<vmem>>) attributes {dimension_semantics = [#tpu.dimension_semantics<parallel>, #tpu.dimension_semantics<parallel>], iteration_bounds = array<i64: 2, 1>, scalar_prefetch = 0 : i64, scratch_operands = 0 : i64, tpu.core_type = #tpu.core_type<tc>, window_params = [{transform_indices = @transform_0, window_bounds = array<i64: 1, 8, 32>}, {transform_indices = @transform_1, window_bounds = array<i64: 1, 8, 32>}, {transform_indices = @transform_2, window_bounds = array<i64: 1, 8, 32>}, {transform_indices = @transform_3, window_bounds = array<i64: 1, 8, 8>}, {transform_indices = @transform_4, window_bounds = array<i64: 1, 8, 32>}, {transform_indices = @transform_5, window_bounds = array<i64: 1, 4, 8, 8>}]} {
    %c0 = arith.constant 0 : index
    %c0_0 = arith.constant 0 : index
    %c0_1 = arith.constant 0 : index
    %0 = vector.load %arg2[%c0, %c0_0, %c0_1] : memref<1x8x32xf32, #tpu.memory_space<vmem>>, vector<1x8x32xf32>
    %1 = vector.shape_cast %0 : vector<1x8x32xf32> to vector<8x32xf32>
    %cst = arith.constant 0.353553385 : f32
    %2 = vector.broadcast %cst : f32 to vector<8x32xf32>
    %3 = arith.mulf %1, %2 : vector<8x32xf32>
    %c0_2 = arith.constant 0 : index
    %c0_3 = arith.constant 0 : index
    %c0_4 = arith.constant 0 : index
    %4 = vector.load %arg3[%c0_2, %c0_3, %c0_4] : memref<1x8x32xf32, #tpu.memory_space<vmem>>, vector<1x8x32xf32>
    %5 = vector.shape_cast %4 : vector<1x8x32xf32> to vector<8x32xf32>
    %c0_5 = arith.constant 0 : index
    %c0_6 = arith.constant 0 : index
    %c0_7 = arith.constant 0 : index
    %6 = vector.load %arg4[%c0_5, %c0_6, %c0_7] : memref<1x8x32xf32, #tpu.memory_space<vmem>>, vector<1x8x32xf32>
    %7 = vector.shape_cast %6 : vector<1x8x32xf32> to vector<8x32xf32>
    %c0_8 = arith.constant 0 : index
    %c0_9 = arith.constant 0 : index
    %c0_10 = arith.constant 0 : index
    %8 = vector.load %arg5[%c0_8, %c0_9, %c0_10] : memref<1x8x8xf32, #tpu.memory_space<vmem>>, vector<1x8x8xf32>
    %9 = vector.shape_cast %8 : vector<1x8x8xf32> to vector<8x8xf32>
    %10 = vector.extract_strided_slice %3 {offsets = [0, 0], sizes = [8, 8], strides = [1, 1]} : vector<8x32xf32> to vector<8x8xf32>
    %11 = vector.extract_strided_slice %5 {offsets = [0, 0], sizes = [8, 8], strides = [1, 1]} : vector<8x32xf32> to vector<8x8xf32>
    %12 = vector.extract_strided_slice %7 {offsets = [0, 0], sizes = [8, 8], strides = [1, 1]} : vector<8x32xf32> to vector<8x8xf32>
    %cst_11 = arith.constant dense<0.000000e+00> : vector<8x8xf32>
    %13 = tpu.matmul %10, %11, %cst_11 {dimension_numbers = #tpu.dot_dimension_numbers<[1], [1], [0], [0], [0, 0, 1, 0], [], []>} : vector<8x8xf32>, vector<8x8xf32>, vector<8x8xf32> -> vector<8x8xf32>
    %14 = arith.addf %13, %9 : vector<8x8xf32>
    %cst_12 = arith.constant dense<0xFF800000> : vector<8xf32>
    %15 = vector.multi_reduction <maximumf>, %14, %cst_12 [1] : vector<8x8xf32> to vector<8xf32>
    %16 = vector.shape_cast %15 : vector<8xf32> to vector<8x1xf32>
    %17 = vector.broadcast %16 : vector<8x1xf32> to vector<8x8xf32>
    %18 = arith.subf %14, %17 : vector<8x8xf32>
    %19 = math.exp %18 : vector<8x8xf32>
    %cst_13 = arith.constant dense<0.000000e+00> : vector<8xf32>
    %20 = vector.multi_reduction <add>, %19, %cst_13 [1] : vector<8x8xf32> to vector<8xf32>
    %21 = vector.shape_cast %20 : vector<8xf32> to vector<8x1xf32>
    %22 = tpu.reciprocal %21 : vector<8x1xf32> -> vector<8x1xf32>
    %23 = vector.broadcast %22 : vector<8x1xf32> to vector<8x8xf32>
    %24 = arith.mulf %19, %23 : vector<8x8xf32>
    %c0_14 = arith.constant 0 : index
    %c0_15 = arith.constant 0 : index
    %c0_16 = arith.constant 0 : index
    %c0_17 = arith.constant 0 : index
    %25 = vector.load %arg7[%c0_14, %c0_15, %c0_16, %c0_17] : memref<1x4x8x8xf32, #tpu.memory_space<vmem>>, vector<1x1x8x8xf32>
    %26 = vector.shape_cast %25 : vector<1x1x8x8xf32> to vector<8x8xf32>
    %27 = vector.shape_cast %24 : vector<8x8xf32> to vector<1x1x8x8xf32>
    tpu.vector_store %arg7[%c0_14, %c0_15, %c0_16, %c0_17], %27 {strides = array<i32>} : memref<1x4x8x8xf32, #tpu.memory_space<vmem>>, vector<1x1x8x8xf32>,
    %cst_18 = arith.constant dense<0.000000e+00> : vector<8x8xf32>
    %28 = tpu.matmul %24, %12, %cst_18 {dimension_numbers = #tpu.dot_dimension_numbers<[1], [0], [0], [1], [0, 0, 1, 1], [], []>} : vector<8x8xf32>, vector<8x8xf32>, vector<8x8xf32> -> vector<8x8xf32>
    %29 = vector.extract_strided_slice %3 {offsets = [0, 8], sizes = [8, 8], strides = [1, 1]} : vector<8x32xf32> to vector<8x8xf32>
    %30 = vector.extract_strided_slice %5 {offsets = [0, 8], sizes = [8, 8], strides = [1, 1]} : vector<8x32xf32> to vector<8x8xf32>
    %31 = vector.extract_strided_slice %7 {offsets = [0, 8], sizes = [8, 8], strides = [1, 1]} : vector<8x32xf32> to vector<8x8xf32>
    %cst_19 = arith.constant dense<0.000000e+00> : vector<8x8xf32>
    %32 = tpu.matmul %29, %30, %cst_19 {dimension_numbers = #tpu.dot_dimension_numbers<[1], [1], [0], [0], [0, 0, 1, 0], [], []>} : vector<8x8xf32>, vector<8x8xf32>, vector<8x8xf32> -> vector<8x8xf32>
    %33 = arith.addf %32, %9 : vector<8x8xf32>
    %cst_20 = arith.constant dense<0xFF800000> : vector<8xf32>
    %34 = vector.multi_reduction <maximumf>, %33, %cst_20 [1] : vector<8x8xf32> to vector<8xf32>
    %35 = vector.shape_cast %34 : vector<8xf32> to vector<8x1xf32>
    %36 = vector.broadcast %35 : vector<8x1xf32> to vector<8x8xf32>
    %37 = arith.subf %33, %36 : vector<8x8xf32>
    %38 = math.exp %37 : vector<8x8xf32>
    %cst_21 = arith.constant dense<0.000000e+00> : vector<8xf32>
    %39 = vector.multi_reduction <add>, %38, %cst_21 [1] : vector<8x8xf32> to vector<8xf32>
    %40 = vector.shape_cast %39 : vector<8xf32> to vector<8x1xf32>
    %41 = tpu.reciprocal %40 : vector<8x1xf32> -> vector<8x1xf32>
    %42 = vector.broadcast %41 : vector<8x1xf32> to vector<8x8xf32>
    %43 = arith.mulf %38, %42 : vector<8x8xf32>
    %c0_22 = arith.constant 0 : index
    %c1 = arith.constant 1 : index
    %c0_23 = arith.constant 0 : index
    %c0_24 = arith.constant 0 : index
    %44 = vector.load %arg7[%c0_22, %c1, %c0_23, %c0_24] : memref<1x4x8x8xf32, #tpu.memory_space<vmem>>, vector<1x1x8x8xf32>
    %45 = vector.shape_cast %44 : vector<1x1x8x8xf32> to vector<8x8xf32>
    %46 = vector.shape_cast %43 : vector<8x8xf32> to vector<1x1x8x8xf32>
    tpu.vector_store %arg7[%c0_22, %c1, %c0_23, %c0_24], %46 {strides = array<i32>} : memref<1x4x8x8xf32, #tpu.memory_space<vmem>>, vector<1x1x8x8xf32>,
    %cst_25 = arith.constant dense<0.000000e+00> : vector<8x8xf32>
    %47 = tpu.matmul %43, %31, %cst_25 {dimension_numbers = #tpu.dot_dimension_numbers<[1], [0], [0], [1], [0, 0, 1, 1], [], []>} : vector<8x8xf32>, vector<8x8xf32>, vector<8x8xf32> -> vector<8x8xf32>
    %48 = vector.extract_strided_slice %3 {offsets = [0, 16], sizes = [8, 8], strides = [1, 1]} : vector<8x32xf32> to vector<8x8xf32>
    %49 = vector.extract_strided_slice %5 {offsets = [0, 16], sizes = [8, 8], strides = [1, 1]} : vector<8x32xf32> to vector<8x8xf32>
    %50 = vector.extract_strided_slice %7 {offsets = [0, 16], sizes = [8, 8], strides = [1, 1]} : vector<8x32xf32> to vector<8x8xf32>
    %cst_26 = arith.constant dense<0.000000e+00> : vector<8x8xf32>
    %51 = tpu.matmul %48, %49, %cst_26 {dimension_numbers = #tpu.dot_dimension_numbers<[1], [1], [0], [0], [0, 0, 1, 0], [], []>} : vector<8x8xf32>, vector<8x8xf32>, vector<8x8xf32> -> vector<8x8xf32>
    %52 = arith.addf %51, %9 : vector<8x8xf32>
    %cst_27 = arith.constant dense<0xFF800000> : vector<8xf32>
    %53 = vector.multi_reduction <maximumf>, %52, %cst_27 [1] : vector<8x8xf32> to vector<8xf32>
    %54 = vector.shape_cast %53 : vector<8xf32> to vector<8x1xf32>
    %55 = vector.broadcast %54 : vector<8x1xf32> to vector<8x8xf32>
    %56 = arith.subf %52, %55 : vector<8x8xf32>
    %57 = math.exp %56 : vector<8x8xf32>
    %cst_28 = arith.constant dense<0.000000e+00> : vector<8xf32>
    %58 = vector.multi_reduction <add>, %57, %cst_28 [1] : vector<8x8xf32> to vector<8xf32>
    %59 = vector.shape_cast %58 : vector<8xf32> to vector<8x1xf32>
    %60 = tpu.reciprocal %59 : vector<8x1xf32> -> vector<8x1xf32>
    %61 = vector.broadcast %60 : vector<8x1xf32> to vector<8x8xf32>
    %62 = arith.mulf %57, %61 : vector<8x8xf32>
    %c0_29 = arith.constant 0 : index
    %c2 = arith.constant 2 : index
    %c0_30 = arith.constant 0 : index
    %c0_31 = arith.constant 0 : index
    %63 = vector.load %arg7[%c0_29, %c2, %c0_30, %c0_31] : memref<1x4x8x8xf32, #tpu.memory_space<vmem>>, vector<1x1x8x8xf32>
    %64 = vector.shape_cast %63 : vector<1x1x8x8xf32> to vector<8x8xf32>
    %65 = vector.shape_cast %62 : vector<8x8xf32> to vector<1x1x8x8xf32>
    tpu.vector_store %arg7[%c0_29, %c2, %c0_30, %c0_31], %65 {strides = array<i32>} : memref<1x4x8x8xf32, #tpu.memory_space<vmem>>, vector<1x1x8x8xf32>,
    %cst_32 = arith.constant dense<0.000000e+00> : vector<8x8xf32>
    %66 = tpu.matmul %62, %50, %cst_32 {dimension_numbers = #tpu.dot_dimension_numbers<[1], [0], [0], [1], [0, 0, 1, 1], [], []>} : vector<8x8xf32>, vector<8x8xf32>, vector<8x8xf32> -> vector<8x8xf32>
    %67 = vector.extract_strided_slice %3 {offsets = [0, 24], sizes = [8, 8], strides = [1, 1]} : vector<8x32xf32> to vector<8x8xf32>
    %68 = vector.extract_strided_slice %5 {offsets = [0, 24], sizes = [8, 8], strides = [1, 1]} : vector<8x32xf32> to vector<8x8xf32>
    %69 = vector.extract_strided_slice %7 {offsets = [0, 24], sizes = [8, 8], strides = [1, 1]} : vector<8x32xf32> to vector<8x8xf32>
    %cst_33 = arith.constant dense<0.000000e+00> : vector<8x8xf32>
    %70 = tpu.matmul %67, %68, %cst_33 {dimension_numbers = #tpu.dot_dimension_numbers<[1], [1], [0], [0], [0, 0, 1, 0], [], []>} : vector<8x8xf32>, vector<8x8xf32>, vector<8x8xf32> -> vector<8x8xf32>
    %71 = arith.addf %70, %9 : vector<8x8xf32>
    %cst_34 = arith.constant dense<0xFF800000> : vector<8xf32>
    %72 = vector.multi_reduction <maximumf>, %71, %cst_34 [1] : vector<8x8xf32> to vector<8xf32>
    %73 = vector.shape_cast %72 : vector<8xf32> to vector<8x1xf32>
    %74 = vector.broadcast %73 : vector<8x1xf32> to vector<8x8xf32>
    %75 = arith.subf %71, %74 : vector<8x8xf32>
    %76 = math.exp %75 : vector<8x8xf32>
    %cst_35 = arith.constant dense<0.000000e+00> : vector<8xf32>
    %77 = vector.multi_reduction <add>, %76, %cst_35 [1] : vector<8x8xf32> to vector<8xf32>
    %78 = vector.shape_cast %77 : vector<8xf32> to vector<8x1xf32>
    %79 = tpu.reciprocal %78 : vector<8x1xf32> -> vector<8x1xf32>
    %80 = vector.broadcast %79 : vector<8x1xf32> to vector<8x8xf32>
    %81 = arith.mulf %76, %80 : vector<8x8xf32>
    %c0_36 = arith.constant 0 : index
    %c3 = arith.constant 3 : index
    %c0_37 = arith.constant 0 : index
    %c0_38 = arith.constant 0 : index
    %82 = vector.load %arg7[%c0_36, %c3, %c0_37, %c0_38] : memref<1x4x8x8xf32, #tpu.memory_space<vmem>>, vector<1x1x8x8xf32>
    %83 = vector.shape_cast %82 : vector<1x1x8x8xf32> to vector<8x8xf32>
    %84 = vector.shape_cast %81 : vector<8x8xf32> to vector<1x1x8x8xf32>
    tpu.vector_store %arg7[%c0_36, %c3, %c0_37, %c0_38], %84 {strides = array<i32>} : memref<1x4x8x8xf32, #tpu.memory_space<vmem>>, vector<1x1x8x8xf32>,
    %cst_39 = arith.constant dense<0.000000e+00> : vector<8x8xf32>
    %85 = tpu.matmul %81, %69, %cst_39 {dimension_numbers = #tpu.dot_dimension_numbers<[1], [0], [0], [1], [0, 0, 1, 1], [], []>} : vector<8x8xf32>, vector<8x8xf32>, vector<8x8xf32> -> vector<8x8xf32>
    %86 = tpu.concatenate %28, %47, %66, %85 in 1 : vector<8x8xf32>, vector<8x8xf32>, vector<8x8xf32>, vector<8x8xf32> -> vector<8x32xf32>
    %c0_40 = arith.constant 0 : index
    %c0_41 = arith.constant 0 : index
    %c0_42 = arith.constant 0 : index
    %87 = vector.load %arg6[%c0_40, %c0_41, %c0_42] : memref<1x8x32xf32, #tpu.memory_space<vmem>>, vector<1x8x32xf32>
    %88 = vector.shape_cast %87 : vector<1x8x32xf32> to vector<8x32xf32>
    %89 = vector.shape_cast %86 : vector<8x32xf32> to vector<1x8x32xf32>
    tpu.vector_store %arg6[%c0_40, %c0_41, %c0_42], %89 {strides = array<i32>} : memref<1x8x32xf32, #tpu.memory_space<vmem>>, vector<1x8x32xf32>,
    return
  }
  func.func @transform_0(%arg0: i32, %arg1: i32) -> (i32, i32, i32) {
    %c0_i32 = arith.constant 0 : i32
    %c0_i32_0 = arith.constant 0 : i32
    return %arg0, %arg1, %c0_i32 : i32, i32, i32
  }
  func.func @transform_1(%arg0: i32, %arg1: i32) -> (i32, i32, i32) {
    %c0_i32 = arith.constant 0 : i32
    %c0_i32_0 = arith.constant 0 : i32
    %c0_i32_1 = arith.constant 0 : i32
    return %arg0, %c0_i32, %c0_i32_0 : i32, i32, i32
  }
  func.func @transform_2(%arg0: i32, %arg1: i32) -> (i32, i32, i32) {
    %c0_i32 = arith.constant 0 : i32
    %c0_i32_0 = arith.constant 0 : i32
    %c0_i32_1 = arith.constant 0 : i32
    return %arg0, %c0_i32, %c0_i32_0 : i32, i32, i32
  }
  func.func @transform_3(%arg0: i32, %arg1: i32) -> (i32, i32, i32) {
    %c0_i32 = arith.constant 0 : i32
    %c0_i32_0 = arith.constant 0 : i32
    return %arg0, %arg1, %c0_i32 : i32, i32, i32
  }
  func.func @transform_4(%arg0: i32, %arg1: i32) -> (i32, i32, i32) {
    %c0_i32 = arith.constant 0 : i32
    %c0_i32_0 = arith.constant 0 : i32
    return %arg0, %arg1, %c0_i32 : i32, i32, i32
  }
  func.func @transform_5(%arg0: i32, %arg1: i32) -> (i32, i32, i32, i32) {
    %c0_i32 = arith.constant 0 : i32
    %c0_i32_0 = arith.constant 0 : i32
    %c0_i32_1 = arith.constant 0 : i32
    return %arg0, %c0_i32, %arg1, %c0_i32_0 : i32, i32, i32, i32
  }
}

</mosaic_0001>

<llo_original>
// kernel: tpu_custom_call.1
$region0: #{tpu_custom_call.1}
  #allocation0 [shape = 'u32[]', space=smem, size = 0x4, offset = 0x4, fixed_abs, tag = 'smem constant byte address 0x4 - core index']
  #allocation1 [shape = 'u32[144,128]{1,0:T(1,128)}', space=vmem, size = 0x12000, scoped, tag = 'internal scratch']
  %s0 = inlined_call_operand.hbm [shape: f32[2,8,32], index: 0, kind: input, shape index: {}]
  %s1 = inlined_call_operand.hbm [shape: f32[2,8,32], index: 1, kind: input, shape index: {}]
  %s2 = inlined_call_operand.hbm [shape: f32[2,8,32], index: 2, kind: input, shape index: {}]
  %s3 = inlined_call_operand.hbm [shape: f32[2,8,8], index: 3, kind: input, shape index: {}]
  %s4 = inlined_call_operand.hbm [shape: f32[2,8,32], index: 4, kind: output, shape index: {0}]
  %s5 = inlined_call_operand.hbm [shape: f32[2,4,8,8], index: 5, kind: output, shape index: {1}]
  %6 = xla_tuple %s4, %s5
  %s7 = sld [smem:[#allocation0]]
  $region73: #{tpu_custom_call.1} parent=0
    _
  %s9 = ssub.s32 1, %s7
  %s10 = scalar_select 0, %s9, %s7
  $region1: #{tpu_custom_call.1} parent=0
    #allocation2 [shape = 'u8[8192]{0}', space=vmem, size = 0x2000, scoped, tag = 'input window, operand 0']
    #allocation3 [shape = 's32[2]{0}', space=sflag, size = 0x8, scoped, tag = 'scoped memory for tpu_custom_call.1']
    #allocation4 [shape = 's32[2]{0}', space=sflag, size = 0x8, scoped, tag = 'scoped memory for tpu_custom_call.1']
    #allocation5 [shape = 'u8[8192]{0}', space=vmem, size = 0x2000, scoped, tag = 'input window, operand 1']
    #allocation6 [shape = 's32[2]{0}', space=sflag, size = 0x8, scoped, tag = 'scoped memory for tpu_custom_call.1']
    #allocation7 [shape = 'u8[8192]{0}', space=vmem, size = 0x2000, scoped, tag = 'input window, operand 2']
    #allocation8 [shape = 'u8[8192]{0}', space=vmem, size = 0x2000, scoped, tag = 'input window, operand 3']
    #allocation9 [shape = 's32[2]{0}', space=sflag, size = 0x8, scoped, tag = 'scoped memory for tpu_custom_call.1']
    #allocation10 [shape = 'u8[8192]{0}', space=vmem, size = 0x2000, scoped, tag = 'output window, operand 0']
    #allocation11 [shape = 'u8[32768]{0}', space=vmem, size = 0x8000, scoped, tag = 'output window, operand 1']
    #allocation12 [shape = 's32[2]{0}', space=sflag, size = 0x8, scoped, tag = 'scoped memory for tpu_custom_call.1']
    %11 = vsyncpa [#allocation3], 0
    %s12 = scalar_lea.sflag [#allocation3], 1
    %13 = vsyncpa %s12, 0
    %14 = vsyncpa [#allocation6], 0
    %s15 = scalar_lea.sflag [#allocation6], 1
    %16 = vsyncpa %s15, 0
    %17 = vsyncpa [#allocation9], 0
    %s18 = scalar_lea.sflag [#allocation9], 1
    %19 = vsyncpa %s18, 0
    %20 = vsyncpa [#allocation4], 0
    %s21 = scalar_lea.sflag [#allocation4], 1
    %22 = vsyncpa %s21, 0
    %23 = vsyncpa [#allocation12], 0
    %s24 = scalar_lea.sflag [#allocation12], 1
    %25 = vsyncpa %s24, 0
    loop: start=0, step=1, limit=4
    $region2: #{tpu_custom_call.1} parent=1 // loop_pre_header
      _
    $region3: #{tpu_custom_call.1} parent=1 // loop_header
      %s27 = sphi 0, %s31
      %p28 = scmp.ge.s32.totalorder %s27, 4
      %s34 = sphi 0, %s46
      %s35 = sphi 0, %s42
      %s36 = sphi 0, %s34
      %s37 = sphi 0, %s35
      %s38 = sphi 0, %s36
      %s39 = sphi 0, %s37
      %s51 = sphi 0, %s53
      %s54 = sphi 0, %s51
      %s55 = sphi 0, %s54
      %s71 = sphi 0, %s55
      %s77 = sphi 0, %s79
      %s80 = sphi 0, %s77
      %s81 = sphi 0, %s80
      %s97 = sphi 0, %s81
      %s103 = sphi 0, %s105
      %s106 = sphi 0, %s103
      %s107 = sphi 0, %s106
      %s123 = sphi 0, %s107
      %s131 = sphi 0, %s133
      %s134 = sphi 0, %s131
      %s135 = sphi 0, %s134
      %s151 = sphi 0, %s135
      %s159 = sphi 0, %s161
      %s162 = sphi 0, %s159
      %s163 = sphi 0, %s162
      %s179 = sphi 0, %s163
      %s187 = sphi 0, %s189
      %s190 = sphi 0, %s187
      %s191 = sphi 0, %s190
      %s207 = sphi 0, %s191
    $region4: #{tpu_custom_call.1} parent=1 // loop_header_branch
      %30 = sbr.rel (%p28) target = $region8
    $region5: #{tpu_custom_call.1} parent=1 // loop_body
      %s32 = ssub.s32 %s27, 1
      %s33 = ssub.s32 %s27, 2
      %s40 = sadd.s32 1, %s35
      %p41 = scmp.ge.s32.totalorder %s40, 1
      %s42 = scalar_select %p41, 0, %s40
      %s43 = sadd.s32 1, %s34
      %s44 = scalar_select %p41, %s43, %s34
      %p45 = scmp.ge.s32.totalorder %s44, 2
      %s46 = scalar_select %p45, 0, %s44
      %s47 = ssub.s32 %s34, %s46
      %s48 = ssub.s32 %s35, %s42
      %s49 = sor.u32 %s47, %s48
      %p50 = scmp.eq.s32.totalorder %s49, 0
      %s52 = sadd.s32 %s51, 1
      %s53 = scalar_select %p50, %s51, %s52
      %p56 = pneg %p50
      %p57 = scmp.eq.s32.totalorder %s27, 1
      %p58 = por %p56, %p57
      %p59 = scmp.ne.s32.totalorder %s51, %s54
      %p60 = scmp.eq.s32.totalorder %s27, 0
      %p61 = por %p59, %p60
      %p62 = scmp.ne.s32.totalorder %s51, %s54
      %p63 = scmp.eq.s32.totalorder %s32, 1
      %p64 = por %p62, %p63
      %p65 = scmp.ne.s32.totalorder %s54, %s55
      %p66 = scmp.eq.s32.totalorder %s32, 0
      %p67 = por %p65, %p66
      %p68 = scmp.ne.s32.totalorder %s54, %s55
      %p69 = scmp.eq.s32.totalorder %s33, 1
      %p70 = por %p68, %p69
      %p72 = scmp.ne.s32.totalorder %s55, %s71
      %p73 = scmp.eq.s32.totalorder %s33, 0
      %p74 = por %p72, %p73
      %s75 = ssub.s32 %s34, %s46
      %p76 = scmp.eq.s32.totalorder %s75, 0
      %s78 = sadd.s32 %s77, 1
      %s79 = scalar_select %p76, %s77, %s78
      %p82 = pneg %p76
      %p83 = scmp.eq.s32.totalorder %s27, 1
      %p84 = por %p82, %p83
      %p85 = scmp.ne.s32.totalorder %s77, %s80
      %p86 = scmp.eq.s32.totalorder %s27, 0
      %p87 = por %p85, %p86
      %p88 = scmp.ne.s32.totalorder %s77, %s80
      %p89 = scmp.eq.s32.totalorder %s32, 1
      %p90 = por %p88, %p89
      %p91 = scmp.ne.s32.totalorder %s80, %s81
      %p92 = scmp.eq.s32.totalorder %s32, 0
      %p93 = por %p91, %p92
      %p94 = scmp.ne.s32.totalorder %s80, %s81
      %p95 = scmp.eq.s32.totalorder %s33, 1
      %p96 = por %p94, %p95
      %p98 = scmp.ne.s32.totalorder %s81, %s97
      %p99 = scmp.eq.s32.totalorder %s33, 0
      %p100 = por %p98, %p99
      %s101 = ssub.s32 %s34, %s46
      %p102 = scmp.eq.s32.totalorder %s101, 0
      %s104 = sadd.s32 %s103, 1
      %s105 = scalar_select %p102, %s103, %s104
      %p108 = pneg %p102
      %p109 = scmp.eq.s32.totalorder %s27, 1
      %p110 = por %p108, %p109
      %p111 = scmp.ne.s32.totalorder %s103, %s106
      %p112 = scmp.eq.s32.totalorder %s27, 0
      %p113 = por %p111, %p112
      %p114 = scmp.ne.s32.totalorder %s103, %s106
      %p115 = scmp.eq.s32.totalorder %s32, 1
      %p116 = por %p114, %p115
      %p117 = scmp.ne.s32.totalorder %s106, %s107
      %p118 = scmp.eq.s32.totalorder %s32, 0
      %p119 = por %p117, %p118
      %p120 = scmp.ne.s32.totalorder %s106, %s107
      %p121 = scmp.eq.s32.totalorder %s33, 1
      %p122 = por %p120, %p121
      %p124 = scmp.ne.s32.totalorder %s107, %s123
      %p125 = scmp.eq.s32.totalorder %s33, 0
      %p126 = por %p124, %p125
      %s127 = ssub.s32 %s34, %s46
      %s128 = ssub.s32 %s35, %s42
      %s129 = sor.u32 %s127, %s128
      %p130 = scmp.eq.s32.totalorder %s129, 0
      %s132 = sadd.s32 %s131, 1
      %s133 = scalar_select %p130, %s131, %s132
      %p136 = pneg %p130
      %p137 = scmp.eq.s32.totalorder %s27, 1
      %p138 = por %p136, %p137
      %p139 = scmp.ne.s32.totalorder %s131, %s134
      %p140 = scmp.eq.s32.totalorder %s27, 0
      %p141 = por %p139, %p140
      %p142 = scmp.ne.s32.totalorder %s131, %s134
      %p143 = scmp.eq.s32.totalorder %s32, 1
      %p144 = por %p142, %p143
      %p145 = scmp.ne.s32.totalorder %s134, %s135
      %p146 = scmp.eq.s32.totalorder %s32, 0
      %p147 = por %p145, %p146
      %p148 = scmp.ne.s32.totalorder %s134, %s135
      %p149 = scmp.eq.s32.totalorder %s33, 1
      %p150 = por %p148, %p149
      %p152 = scmp.ne.s32.totalorder %s135, %s151
      %p153 = scmp.eq.s32.totalorder %s33, 0
      %p154 = por %p152, %p153
      %s155 = ssub.s32 %s34, %s46
      %s156 = ssub.s32 %s35, %s42
      %s157 = sor.u32 %s155, %s156
      %p158 = scmp.eq.s32.totalorder %s157, 0
      %s160 = sadd.s32 %s159, 1
      %s161 = scalar_select %p158, %s159, %s160
      %p164 = pneg %p158
      %p165 = scmp.eq.s32.totalorder %s27, 1
      %p166 = por %p164, %p165
      %p167 = scmp.ne.s32.totalorder %s159, %s162
      %p168 = scmp.eq.s32.totalorder %s27, 0
      %p169 = por %p167, %p168
      %p170 = scmp.ne.s32.totalorder %s159, %s162
      %p171 = scmp.eq.s32.totalorder %s32, 1
      %p172 = por %p170, %p171
      %p173 = scmp.ne.s32.totalorder %s162, %s163
      %p174 = scmp.eq.s32.totalorder %s32, 0
      %p175 = por %p173, %p174
      %p176 = scmp.ne.s32.totalorder %s162, %s163
      %p177 = scmp.eq.s32.totalorder %s33, 1
      %p178 = por %p176, %p177
      %p180 = scmp.ne.s32.totalorder %s163, %s179
      %p181 = scmp.eq.s32.totalorder %s33, 0
      %p182 = por %p180, %p181
      %s183 = ssub.s32 %s34, %s46
      %s184 = ssub.s32 %s35, %s42
      %s185 = sor.u32 %s183, %s184
      %p186 = scmp.eq.s32.totalorder %s185, 0
      %s188 = sadd.s32 %s187, 1
      %s189 = scalar_select %p186, %s187, %s188
      %p192 = pneg %p186
      %p193 = scmp.eq.s32.totalorder %s27, 1
      %p194 = por %p192, %p193
      %p195 = scmp.ne.s32.totalorder %s187, %s190
      %p196 = scmp.eq.s32.totalorder %s27, 0
      %p197 = por %p195, %p196
      %p198 = scmp.ne.s32.totalorder %s187, %s190
      %p199 = scmp.eq.s32.totalorder %s32, 1
      %p200 = por %p198, %p199
      %p201 = scmp.ne.s32.totalorder %s190, %s191
      %p202 = scmp.eq.s32.totalorder %s32, 0
      %p203 = por %p201, %p202
      %p204 = scmp.ne.s32.totalorder %s190, %s191
      %p205 = scmp.eq.s32.totalorder %s33, 1
      %p206 = por %p204, %p205
      %p208 = scmp.ne.s32.totalorder %s191, %s207
      %p209 = scmp.eq.s32.totalorder %s33, 0
      %p210 = por %p208, %p209
      %p211 = scmp.le.s32.totalorder 1, %s27
      %p212 = scmp.lt.s32.totalorder %s27, 3
      %p213 = pnand %p211, %p212
      %p214 = pneg %p213
      // Predicated region
      $region9: #{tpu_custom_call.1} parent=5 // pred_check
        _
      $region10: #{tpu_custom_call.1} parent=5 // pred_check_branch
        %216 = sbr.rel (%p213) target = $region12
      $region11: #{tpu_custom_call.1} parent=5 // pred_region
        %s217 = ssub.s32 %s27, 1
      $region12: #{tpu_custom_call.1} parent=5 // pred_fallthru
        _
      %p218 = scmp.lt.s32.totalorder %s27, 2
      // Predicated region
      $region13: #{tpu_custom_call.1} parent=5 // pred_check
        %p219 = pneg %p218
      $region14: #{tpu_custom_call.1} parent=5 // pred_check_branch
        %221 = sbr.rel (%p219) target = $region16
      $region15: #{tpu_custom_call.1} parent=5 // pred_region
        // Predicated region
        $region17: #{tpu_custom_call.1} parent=15 // pred_check
          %p222 = pneg %p61
        $region18: #{tpu_custom_call.1} parent=15 // pred_check_branch
          %224 = sbr.rel (%p222) target = $region20
        $region19: #{tpu_custom_call.1} parent=15 // pred_region
          %s225 = sand.u32 %s51, 1
          %s226 = scalar_lea.sflag [#allocation3], %s225
          %s227 = sand.u32 %s51, 1
          %s228 = smul.addr %s227, 8
          %s229 = scalar_lea.vmem [#allocation2], %s228
          %s231 = ssub.s32 128, 128
          %232 = vsyncadd %s226, %s231
          %s233 = sadd.s32 %s35, %s34
          %s234 = smul.addr %s233, 128
          %s235 = scalar_lea.hbm %s0, %s234
          %s237 = sshll.u32 %s229, 4
          %s238 = int_to_ptr.vmem [resolvable:$true] %s237
          %240 = dma.hbm_to_vmem [thread:$0]  %s235, 128, %s238, %s226
        $region20: #{tpu_custom_call.1} parent=15 // pred_fallthru
          _
        // Predicated region
        $region21: #{tpu_custom_call.1} parent=15 // pred_check
          %p241 = pneg %p87
        $region22: #{tpu_custom_call.1} parent=15 // pred_check_branch
          %243 = sbr.rel (%p241) target = $region24
        $region23: #{tpu_custom_call.1} parent=15 // pred_region
          %s244 = sand.u32 %s27, 1
          %s245 = scalar_lea.sflag [#allocation6], %s244
          %s246 = sand.u32 %s77, 1
          %s247 = smul.addr %s246, 8
          %s248 = scalar_lea.vmem [#allocation5], %s247
          %s250 = ssub.s32 128, 128
          %251 = vsyncadd %s245, %s250
          %s252 = smul.addr %s34, 128
          %s253 = scalar_lea.hbm %s1, %s252
          %s255 = sshll.u32 %s248, 4
          %s256 = int_to_ptr.vmem [resolvable:$true] %s255
          %258 = dma.hbm_to_vmem [thread:$0]  %s253, 128, %s256, %s245
        $region24: #{tpu_custom_call.1} parent=15 // pred_fallthru
          _
        // Predicated region
        $region25: #{tpu_custom_call.1} parent=15 // pred_check
          %p259 = pneg %p113
        $region26: #{tpu_custom_call.1} parent=15 // pred_check_branch
          %261 = sbr.rel (%p259) target = $region28
        $region27: #{tpu_custom_call.1} parent=15 // pred_region
          %s262 = sand.u32 %s27, 1
          %s263 = scalar_lea.sflag [#allocation6], %s262
          %s264 = sand.u32 %s103, 1
          %s265 = smul.addr %s264, 8
          %s266 = scalar_lea.vmem [#allocation7], %s265
          %s268 = ssub.s32 128, 128
          %269 = vsyncadd %s263, %s268
          %s270 = smul.addr %s34, 128
          %s271 = scalar_lea.hbm %s2, %s270
          %s273 = sshll.u32 %s266, 4
          %s274 = int_to_ptr.vmem [resolvable:$true] %s273
          %276 = dma.hbm_to_vmem [thread:$0]  %s271, 128, %s274, %s263
        $region28: #{tpu_custom_call.1} parent=15 // pred_fallthru
          _
        // Predicated region
        $region29: #{tpu_custom_call.1} parent=15 // pred_check
          %p277 = pneg %p141
        $region30: #{tpu_custom_call.1} parent=15 // pred_check_branch
          %279 = sbr.rel (%p277) target = $region32
        $region31: #{tpu_custom_call.1} parent=15 // pred_region
          %s280 = sand.u32 %s131, 1
          %s281 = scalar_lea.sflag [#allocation9], %s280
          %s282 = sand.u32 %s131, 1
          %s283 = smul.addr %s282, 8
          %s284 = scalar_lea.vmem [#allocation8], %s283
          %s286 = ssub.s32 128, 128
          %287 = vsyncadd %s281, %s286
          %s288 = sadd.s32 %s35, %s34
          %s289 = smul.addr %s288, 128
          %s290 = scalar_lea.hbm %s3, %s289
          %s292 = sshll.u32 %s284, 4
          %s293 = int_to_ptr.vmem [resolvable:$true] %s292
          %295 = dma.hbm_to_vmem [thread:$0]  %s290, 128, %s293, %s281
        $region32: #{tpu_custom_call.1} parent=15 // pred_fallthru
          _
      $region16: #{tpu_custom_call.1} parent=5 // pred_fallthru
        _
      %p296 = scmp.le.s32.totalorder 1, %s27
      %p297 = scmp.lt.s32.totalorder %s27, 3
      %p298 = pnand %p296, %p297
      %p299 = pneg %p298
      // Predicated region
      $region33: #{tpu_custom_call.1} parent=5 // pred_check
        _
      $region34: #{tpu_custom_call.1} parent=5 // pred_check_branch
        %301 = sbr.rel (%p298) target = $region36
      $region35: #{tpu_custom_call.1} parent=5 // pred_region
        %s302 = ssub.s32 %s27, 1
        %s303 = sand.u32 %s54, 1
        %s304 = scalar_lea.sflag [#allocation3], %s303
        %s305 = sand.u32 %s54, 1
        %s306 = smul.addr %s305, 8
        %s307 = scalar_lea.vmem [#allocation2], %s306
        // Predicated region
        $region37: #{tpu_custom_call.1} parent=35 // pred_check
          %p308 = pneg %p67
        $region38: #{tpu_custom_call.1} parent=35 // pred_check_branch
          %310 = sbr.rel (%p308) target = $region40
        $region39: #{tpu_custom_call.1} parent=35 // pred_region
          %311 = dma.done %s304, 128
        $region40: #{tpu_custom_call.1} parent=35 // pred_fallthru
          _
        %s312 = sand.u32 %s32, 1
        %s313 = scalar_lea.sflag [#allocation6], %s312
        %s314 = sand.u32 %s80, 1
        %s315 = smul.addr %s314, 8
        %s316 = scalar_lea.vmem [#allocation5], %s315
        // Predicated region
        $region41: #{tpu_custom_call.1} parent=35 // pred_check
          %p317 = pneg %p93
        $region42: #{tpu_custom_call.1} parent=35 // pred_check_branch
          %319 = sbr.rel (%p317) target = $region44
        $region43: #{tpu_custom_call.1} parent=35 // pred_region
          %320 = dma.done %s313, 128
        $region44: #{tpu_custom_call.1} parent=35 // pred_fallthru
          _
        %s321 = sand.u32 %s32, 1
        %s322 = scalar_lea.sflag [#allocation6], %s321
        %s323 = sand.u32 %s106, 1
        %s324 = smul.addr %s323, 8
        %s325 = scalar_lea.vmem [#allocation7], %s324
        // Predicated region
        $region45: #{tpu_custom_call.1} parent=35 // pred_check
          %p326 = pneg %p119
        $region46: #{tpu_custom_call.1} parent=35 // pred_check_branch
          %328 = sbr.rel (%p326) target = $region48
        $region47: #{tpu_custom_call.1} parent=35 // pred_region
          %329 = dma.done %s322, 128
        $region48: #{tpu_custom_call.1} parent=35 // pred_fallthru
          _
        %s330 = sand.u32 %s134, 1
        %s331 = scalar_lea.sflag [#allocation9], %s330
        %s332 = sand.u32 %s134, 1
        %s333 = smul.addr %s332, 8
        %s334 = scalar_lea.vmem [#allocation8], %s333
        // Predicated region
        $region49: #{tpu_custom_call.1} parent=35 // pred_check
          %p335 = pneg %p147
        $region50: #{tpu_custom_call.1} parent=35 // pred_check_branch
          %337 = sbr.rel (%p335) target = $region52
        $region51: #{tpu_custom_call.1} parent=35 // pred_region
          %338 = dma.done %s331, 128
        $region52: #{tpu_custom_call.1} parent=35 // pred_fallthru
          _
        %s339 = sand.u32 %s54, 1
        %s340 = scalar_lea.sflag [#allocation3], %s339
        %s341 = sand.u32 %s54, 1
        %s342 = smul.addr %s341, 8
        %s343 = scalar_lea.vmem [#allocation2], %s342
        %p344 = pneg %p67
        %p345 = pneg %p64
        %s346 = sand.u32 %s32, 1
        %s347 = scalar_lea.sflag [#allocation6], %s346
        %s348 = sand.u32 %s80, 1
        %s349 = smul.addr %s348, 8
        %s350 = scalar_lea.vmem [#allocation5], %s349
        %p351 = pneg %p93
        %p352 = pneg %p90
        %s353 = sand.u32 %s32, 1
        %s354 = scalar_lea.sflag [#allocation6], %s353
        %s355 = sand.u32 %s106, 1
        %s356 = smul.addr %s355, 8
        %s357 = scalar_lea.vmem [#allocation7], %s356
        %p358 = pneg %p119
        %p359 = pneg %p116
        %s360 = sand.u32 %s134, 1
        %s361 = scalar_lea.sflag [#allocation9], %s360
        %s362 = sand.u32 %s134, 1
        %s363 = smul.addr %s362, 8
        %s364 = scalar_lea.vmem [#allocation8], %s363
        %p365 = pneg %p147
        %p366 = pneg %p144
        %p367 = pneg %p175
        %p368 = pneg %p172
        %s369 = sand.u32 %s162, 1
        %s370 = scalar_lea.sflag [#allocation4], %s369
        %s371 = sand.u32 %s162, 1
        %s372 = smul.addr %s371, 8
        %s373 = scalar_lea.vmem [#allocation10], %s372
        %p374 = pneg %p203
        %p375 = pneg %p200
        %s376 = sand.u32 %s190, 1
        %s377 = scalar_lea.sflag [#allocation12], %s376
        %s378 = sand.u32 %s190, 1
        %s379 = smul.addr %s378, 32
        %s380 = scalar_lea.vmem [#allocation11], %s379
        %v381 = vld [vmem:[%s307] sm:$0xff]
        %v382 = vmul.f32 %v381, 0.35355338
        %v383 = vld [vmem:[%s316] sm:$0xff]
        %v384 = vld [vmem:[%s325] sm:$0xff]
        %v385 = vld [vmem:[%s334] sm:$0xff]
        %vm386 = vcmask 64512
        %v388 = vsel %vm386, %v382, 0
        %v391 = vsel %vm386, %v383, 0
        %393 = vmatprep.subr.mxu0 0.0
        %394 = vmatpush1.xpose.msra.mxu0 %v391
        %395 = vmatprep.subr.mxu0 0.0
        %396 = vmatpush1.xpose.msra.mxu0 0.0
        %397 = vmatprep.subr.mxu0 0.0
        %398 = vmatpush1.xpose.msra.mxu0 0.0
        %399 = vmatprep.subr.mxu0 0.0
        %400 = vmatpush1.xpose.msra.mxu0 0.0
        %401 = vmatprep.subr.mxu0 0.0
        %402 = vmatpush1.xpose.msra.mxu0 0.0
        %403 = vmatprep.subr.mxu0 0.0
        %404 = vmatpush1.xpose.msra.mxu0 0.0
        %405 = vmatprep.subr.mxu0 0.0
        %406 = vmatpush1.xpose.msra.mxu0 0.0
        %407 = vmatprep.subr.mxu0 0.0
        %408 = vmatpush1.xpose.msra.mxu0 0.0
        %409 = vmatprep.subr.mxu0 0.0
        %410 = vmatpush1.xpose.msra.mxu0 0.0
        %411 = vmatprep.subr.mxu0 0.0
        %412 = vmatpush1.xpose.msra.mxu0 0.0
        %413 = vmatprep.subr.mxu0 0.0
        %414 = vmatpush1.xpose.msra.mxu0 0.0
        %415 = vmatprep.subr.mxu0 0.0
        %416 = vmatpush1.xpose.msra.mxu0 0.0
        %417 = vmatprep.subr.mxu0 0.0
        %418 = vmatpush1.xpose.msra.mxu0 0.0
        %419 = vmatprep.subr.mxu0 0.0
        %420 = vmatpush1.xpose.msra.mxu0 0.0
        %421 = vmatprep.subr.mxu0 0.0
        %422 = vmatpush1.xpose.msra.mxu0 0.0
        %423 = vmatprep.subr.mxu0 0.0
        %424 = vmatpush1.xpose.msra.mxu0 0.0
        %425 = vmatprep.subr.mxu0 0.0
        %426 = vmatpush1.xpose.msra.mxu0 0.0
        %427 = vmatprep.subr.mxu0 0.0
        %428 = vmatpush1.xpose.msra.mxu0 0.0
        %429 = vmatprep.subr.mxu0 0.0
        %430 = vmatpush1.xpose.msra.mxu0 0.0
        %431 = vmatprep.subr.mxu0 0.0
        %432 = vmatpush1.xpose.msra.mxu0 0.0
        %433 = vmatprep.subr.mxu0 0.0
        %434 = vmatpush1.xpose.msra.mxu0 0.0
        %435 = vmatprep.subr.mxu0 0.0
        %436 = vmatpush1.xpose.msra.mxu0 0.0
        %437 = vmatprep.subr.mxu0 0.0
        %438 = vmatpush1.xpose.msra.mxu0 0.0
        %439 = vmatprep.subr.mxu0 0.0
        %440 = vmatpush1.xpose.msra.mxu0 0.0
        %441 = vmatprep.subr.mxu0 0.0
        %442 = vmatpush1.xpose.msra.mxu0 0.0
        %443 = vmatprep.subr.mxu0 0.0
        %444 = vmatpush1.xpose.msra.mxu0 0.0
        %445 = vmatprep.subr.mxu0 0.0
        %446 = vmatpush1.xpose.msra.mxu0 0.0
        %447 = vmatprep.subr.mxu0 0.0
        %448 = vmatpush1.xpose.msra.mxu0 0.0
        %449 = vmatprep.subr.mxu0 0.0
        %450 = vmatpush1.xpose.msra.mxu0 0.0
        %451 = vmatprep.subr.mxu0 0.0
        %452 = vmatpush1.xpose.msra.mxu0 0.0
        %453 = vmatprep.subr.mxu0 0.0
        %454 = vmatpush1.xpose.msra.mxu0 0.0
        %455 = vmatprep.subr.mxu0 0.0
        %456 = vmatpush1.xpose.msra.mxu0 0.0
        %457 = vmatprep.mubr.f32.mxu0 0.0
        %458 = vmatmul.mubr.f32.gmra.mrb[0].mxu0 %v388
        %v459 = vpop.f32.mrb[0].mxu0
        %v460 = vadd.f32 %v385, %v459
        %v461 = vpop.f32.mrb[0].mxu0
        %462 = vdwg.mxu0
        %v463 = vsel %vm386, %v460, -inf
        %464 = vmax.xlane.f32.xlu0 %v463
        %v465 = vpop.xlane.xlu0 %464
        %v466 = vsub.f32 %v460, %v465
        %v467 = vmul.f32 %v466, 1.442695
        %v468 = vpow.pop %v467
        %v469 = vsel %vm386, %v468, 0.0
        %470 = vadd.xlane.f32.xlu0 %v469
        %v471 = vpop.xlane.xlu0 %470
        %v472 = vrcp.pop %v471
        %v473 = vmul.f32 %v468, %v472
        %474 = vst.msk [vmem:[%s380] sm:$0xff] %vm386, %v473
        %v476 = vsel %vm386, %v473, 0
        %478 = vmatprep.subr.mxu0 0.0
        %479 = vmatpush1.msra.mxu0 %v384
        %480 = vmatprep.subr.mxu0 0.0
        %481 = vmatpush1.msra.mxu0 0.0
        %482 = vmatprep.subr.mxu0 0.0
        %483 = vmatpush1.msra.mxu0 0.0
        %484 = vmatprep.subr.mxu0 0.0
        %485 = vmatpush1.msra.mxu0 0.0
        %486 = vmatprep.subr.mxu0 0.0
        %487 = vmatpush1.msra.mxu0 0.0
        %488 = vmatprep.subr.mxu0 0.0
        %489 = vmatpush1.msra.mxu0 0.0
        %490 = vmatprep.subr.mxu0 0.0
        %491 = vmatpush1.msra.mxu0 0.0
        %492 = vmatprep.subr.mxu0 0.0
        %493 = vmatpush1.msra.mxu0 0.0
        %494 = vmatprep.subr.mxu0 0.0
        %495 = vmatpush1.msra.mxu0 0.0
        %496 = vmatprep.subr.mxu0 0.0
        %497 = vmatpush1.msra.mxu0 0.0
        %498 = vmatprep.subr.mxu0 0.0
        %499 = vmatpush1.msra.mxu0 0.0
        %500 = vmatprep.subr.mxu0 0.0
        %501 = vmatpush1.msra.mxu0 0.0
        %502 = vmatprep.subr.mxu0 0.0
        %503 = vmatpush1.msra.mxu0 0.0
        %504 = vmatprep.subr.mxu0 0.0
        %505 = vmatpush1.msra.mxu0 0.0
        %506 = vmatprep.subr.mxu0 0.0
        %507 = vmatpush1.msra.mxu0 0.0
        %508 = vmatprep.subr.mxu0 0.0
        %509 = vmatpush1.msra.mxu0 0.0
        %510 = vmatprep.subr.mxu0 0.0
        %511 = vmatpush1.msra.mxu0 0.0
        %512 = vmatprep.subr.mxu0 0.0
        %513 = vmatpush1.msra.mxu0 0.0
        %514 = vmatprep.subr.mxu0 0.0
        %515 = vmatpush1.msra.mxu0 0.0
        %516 = vmatprep.subr.mxu0 0.0
        %517 = vmatpush1.msra.mxu0 0.0
        %518 = vmatprep.subr.mxu0 0.0
        %519 = vmatpush1.msra.mxu0 0.0
        %520 = vmatprep.subr.mxu0 0.0
        %521 = vmatpush1.msra.mxu0 0.0
        %522 = vmatprep.subr.mxu0 0.0
        %523 = vmatpush1.msra.mxu0 0.0
        %524 = vmatprep.subr.mxu0 0.0
        %525 = vmatpush1.msra.mxu0 0.0
        %526 = vmatprep.subr.mxu0 0.0
        %527 = vmatpush1.msra.mxu0 0.0
        %528 = vmatprep.subr.mxu0 0.0
        %529 = vmatpush1.msra.mxu0 0.0
        %530 = vmatprep.subr.mxu0 0.0
        %531 = vmatpush1.msra.mxu0 0.0
        %532 = vmatprep.subr.mxu0 0.0
        %533 = vmatpush1.msra.mxu0 0.0
        %534 = vmatprep.subr.mxu0 0.0
        %535 = vmatpush1.msra.mxu0 0.0
        %536 = vmatprep.subr.mxu0 0.0
        %537 = vmatpush1.msra.mxu0 0.0
        %538 = vmatprep.subr.mxu0 0.0
        %539 = vmatpush1.msra.mxu0 0.0
        %540 = vmatprep.subr.mxu0 0.0
        %541 = vmatpush1.msra.mxu0 0.0
        %542 = vmatprep.mubr.f32.mxu0 0.0
        %543 = vmatmul.mubr.f32.gmra.mrb[0].mxu0 %v476
        %v544 = vpop.f32.mrb[0].mxu0
        %v545 = vadd.f32 0.0, %v544
        %v546 = vpop.f32.mrb[0].mxu0
        %547 = vdwg.mxu0
        %548 = vrot.lane.b32.xlu0 %v382, 120
        %v549 = vpop.permute.xlu0 %548
        %550 = vrot.lane.b32.xlu0 %v383, 120
        %v551 = vpop.permute.xlu0 %550
        %v552 = vsel %vm386, %v549, 0
        %v554 = vsel %vm386, %v551, 0
        %556 = vmatprep.subr.mxu0 0.0
        %557 = vmatpush1.xpose.msra.mxu0 %v554
        %558 = vmatprep.subr.mxu0 0.0
        %559 = vmatpush1.xpose.msra.mxu0 0.0
        %560 = vmatprep.subr.mxu0 0.0
        %561 = vmatpush1.xpose.msra.mxu0 0.0
        %562 = vmatprep.subr.mxu0 0.0
        %563 = vmatpush1.xpose.msra.mxu0 0.0
        %564 = vmatprep.subr.mxu0 0.0
        %565 = vmatpush1.xpose.msra.mxu0 0.0
        %566 = vmatprep.subr.mxu0 0.0
        %567 = vmatpush1.xpose.msra.mxu0 0.0
        %568 = vmatprep.subr.mxu0 0.0
        %569 = vmatpush1.xpose.msra.mxu0 0.0
        %570 = vmatprep.subr.mxu0 0.0
        %571 = vmatpush1.xpose.msra.mxu0 0.0
        %572 = vmatprep.subr.mxu0 0.0
        %573 = vmatpush1.xpose.msra.mxu0 0.0
        %574 = vmatprep.subr.mxu0 0.0
        %575 = vmatpush1.xpose.msra.mxu0 0.0
        %576 = vmatprep.subr.mxu0 0.0
        %577 = vmatpush1.xpose.msra.mxu0 0.0
        %578 = vmatprep.subr.mxu0 0.0
        %579 = vmatpush1.xpose.msra.mxu0 0.0
        %580 = vmatprep.subr.mxu0 0.0
        %581 = vmatpush1.xpose.msra.mxu0 0.0
        %582 = vmatprep.subr.mxu0 0.0
        %583 = vmatpush1.xpose.msra.mxu0 0.0
        %584 = vmatprep.subr.mxu0 0.0
        %585 = vmatpush1.xpose.msra.mxu0 0.0
        %586 = vmatprep.subr.mxu0 0.0
        %587 = vmatpush1.xpose.msra.mxu0 0.0
        %588 = vmatprep.subr.mxu0 0.0
        %589 = vmatpush1.xpose.msra.mxu0 0.0
        %590 = vmatprep.subr.mxu0 0.0
        %591 = vmatpush1.xpose.msra.mxu0 0.0
        %592 = vmatprep.subr.mxu0 0.0
        %593 = vmatpush1.xpose.msra.mxu0 0.0
        %594 = vmatprep.subr.mxu0 0.0
        %595 = vmatpush1.xpose.msra.mxu0 0.0
        %596 = vmatprep.subr.mxu0 0.0
        %597 = vmatpush1.xpose.msra.mxu0 0.0
        %598 = vmatprep.subr.mxu0 0.0
        %599 = vmatpush1.xpose.msra.mxu0 0.0
        %600 = vmatprep.subr.mxu0 0.0
        %601 = vmatpush1.xpose.msra.mxu0 0.0
        %602 = vmatprep.subr.mxu0 0.0
        %603 = vmatpush1.xpose.msra.mxu0 0.0
        %604 = vmatprep.subr.mxu0 0.0
        %605 = vmatpush1.xpose.msra.mxu0 0.0
        %606 = vmatprep.subr.mxu0 0.0
        %607 = vmatpush1.xpose.msra.mxu0 0.0
        %608 = vmatprep.subr.mxu0 0.0
        %609 = vmatpush1.xpose.msra.mxu0 0.0
        %610 = vmatprep.subr.mxu0 0.0
        %611 = vmatpush1.xpose.msra.mxu0 0.0
        %612 = vmatprep.subr.mxu0 0.0
        %613 = vmatpush1.xpose.msra.mxu0 0.0
        %614 = vmatprep.subr.mxu0 0.0
        %615 = vmatpush1.xpose.msra.mxu0 0.0
        %616 = vmatprep.subr.mxu0 0.0
        %617 = vmatpush1.xpose.msra.mxu0 0.0
        %618 = vmatprep.subr.mxu0 0.0
        %619 = vmatpush1.xpose.msra.mxu0 0.0
        %620 = vmatprep.mubr.f32.mxu0 0.0
        %621 = vmatmul.mubr.f32.gmra.mrb[0].mxu0 %v552
        %v622 = vpop.f32.mrb[0].mxu0
        %v623 = vadd.f32 %v385, %v622
        %v624 = vpop.f32.mrb[0].mxu0
        %625 = vdwg.mxu0
        %v626 = vsel %vm386, %v623, -inf
        %627 = vmax.xlane.f32.xlu0 %v626
        %v628 = vpop.xlane.xlu0 %627
        %v629 = vsub.f32 %v623, %v628
        %v630 = vmul.f32 %v629, 1.442695
        %v631 = vpow.pop %v630
        %v632 = vsel %vm386, %v631, 0.0
        %633 = vadd.xlane.f32.xlu0 %v632
        %v634 = vpop.xlane.xlu0 %633
        %v635 = vrcp.pop %v634
        %v636 = vmul.f32 %v631, %v635
        %s637 = scalar_lea.vmem %s380, 8 [#allocation11]
        %638 = vst.msk [vmem:[%s637] sm:$0xff] %vm386, %v636
        %640 = vrot.lane.b32.xlu0 %v384, 120
        %v641 = vpop.permute.xlu0 %640
        %v644 = vsel %vm386, %v636, 0
        %646 = vmatprep.subr.mxu0 0.0
        %647 = vmatpush1.msra.mxu0 %v641
        %648 = vmatprep.subr.mxu0 0.0
        %649 = vmatpush1.msra.mxu0 0.0
        %650 = vmatprep.subr.mxu0 0.0
        %651 = vmatpush1.msra.mxu0 0.0
        %652 = vmatprep.subr.mxu0 0.0
        %653 = vmatpush1.msra.mxu0 0.0
        %654 = vmatprep.subr.mxu0 0.0
        %655 = vmatpush1.msra.mxu0 0.0
        %656 = vmatprep.subr.mxu0 0.0
        %657 = vmatpush1.msra.mxu0 0.0
        %658 = vmatprep.subr.mxu0 0.0
        %659 = vmatpush1.msra.mxu0 0.0
        %660 = vmatprep.subr.mxu0 0.0
        %661 = vmatpush1.msra.mxu0 0.0
        %662 = vmatprep.subr.mxu0 0.0
        %663 = vmatpush1.msra.mxu0 0.0
        %664 = vmatprep.subr.mxu0 0.0
        %665 = vmatpush1.msra.mxu0 0.0
        %666 = vmatprep.subr.mxu0 0.0
        %667 = vmatpush1.msra.mxu0 0.0
        %668 = vmatprep.subr.mxu0 0.0
        %669 = vmatpush1.msra.mxu0 0.0
        %670 = vmatprep.subr.mxu0 0.0
        %671 = vmatpush1.msra.mxu0 0.0
        %672 = vmatprep.subr.mxu0 0.0
        %673 = vmatpush1.msra.mxu0 0.0
        %674 = vmatprep.subr.mxu0 0.0
        %675 = vmatpush1.msra.mxu0 0.0
        %676 = vmatprep.subr.mxu0 0.0
        %677 = vmatpush1.msra.mxu0 0.0
        %678 = vmatprep.subr.mxu0 0.0
        %679 = vmatpush1.msra.mxu0 0.0
        %680 = vmatprep.subr.mxu0 0.0
        %681 = vmatpush1.msra.mxu0 0.0
        %682 = vmatprep.subr.mxu0 0.0
        %683 = vmatpush1.msra.mxu0 0.0
        %684 = vmatprep.subr.mxu0 0.0
        %685 = vmatpush1.msra.mxu0 0.0
        %686 = vmatprep.subr.mxu0 0.0
        %687 = vmatpush1.msra.mxu0 0.0
        %688 = vmatprep.subr.mxu0 0.0
        %689 = vmatpush1.msra.mxu0 0.0
        %690 = vmatprep.subr.mxu0 0.0
        %691 = vmatpush1.msra.mxu0 0.0
        %692 = vmatprep.subr.mxu0 0.0
        %693 = vmatpush1.msra.mxu0 0.0
        %694 = vmatprep.subr.mxu0 0.0
        %695 = vmatpush1.msra.mxu0 0.0
        %696 = vmatprep.subr.mxu0 0.0
        %697 = vmatpush1.msra.mxu0 0.0
        %698 = vmatprep.subr.mxu0 0.0
        %699 = vmatpush1.msra.mxu0 0.0
        %700 = vmatprep.subr.mxu0 0.0
        %701 = vmatpush1.msra.mxu0 0.0
        %702 = vmatprep.subr.mxu0 0.0
        %703 = vmatpush1.msra.mxu0 0.0
        %704 = vmatprep.subr.mxu0 0.0
        %705 = vmatpush1.msra.mxu0 0.0
        %706 = vmatprep.subr.mxu0 0.0
        %707 = vmatpush1.msra.mxu0 0.0
        %708 = vmatprep.subr.mxu0 0.0
        %709 = vmatpush1.msra.mxu0 0.0
        %710 = vmatprep.mubr.f32.mxu0 0.0
        %711 = vmatmul.mubr.f32.gmra.mrb[0].mxu0 %v644
        %v712 = vpop.f32.mrb[0].mxu0
        %v713 = vadd.f32 0.0, %v712
        %v714 = vpop.f32.mrb[0].mxu0
        %715 = vdwg.mxu0
        %716 = vrot.lane.b32.xlu0 %v382, 112
        %v717 = vpop.permute.xlu0 %716
        %718 = vrot.lane.b32.xlu0 %v383, 112
        %v719 = vpop.permute.xlu0 %718
        %v720 = vsel %vm386, %v717, 0
        %v722 = vsel %vm386, %v719, 0
        %724 = vmatprep.subr.mxu0 0.0
        %725 = vmatpush1.xpose.msra.mxu0 %v722
        %726 = vmatprep.subr.mxu0 0.0
        %727 = vmatpush1.xpose.msra.mxu0 0.0
        %728 = vmatprep.subr.mxu0 0.0
        %729 = vmatpush1.xpose.msra.mxu0 0.0
        %730 = vmatprep.subr.mxu0 0.0
        %731 = vmatpush1.xpose.msra.mxu0 0.0
        %732 = vmatprep.subr.mxu0 0.0
        %733 = vmatpush1.xpose.msra.mxu0 0.0
        %734 = vmatprep.subr.mxu0 0.0
        %735 = vmatpush1.xpose.msra.mxu0 0.0
        %736 = vmatprep.subr.mxu0 0.0
        %737 = vmatpush1.xpose.msra.mxu0 0.0
        %738 = vmatprep.subr.mxu0 0.0
        %739 = vmatpush1.xpose.msra.mxu0 0.0
        %740 = vmatprep.subr.mxu0 0.0
        %741 = vmatpush1.xpose.msra.mxu0 0.0
        %742 = vmatprep.subr.mxu0 0.0
        %743 = vmatpush1.xpose.msra.mxu0 0.0
        %744 = vmatprep.subr.mxu0 0.0
        %745 = vmatpush1.xpose.msra.mxu0 0.0
        %746 = vmatprep.subr.mxu0 0.0
        %747 = vmatpush1.xpose.msra.mxu0 0.0
        %748 = vmatprep.subr.mxu0 0.0
        %749 = vmatpush1.xpose.msra.mxu0 0.0
        %750 = vmatprep.subr.mxu0 0.0
        %751 = vmatpush1.xpose.msra.mxu0 0.0
        %752 = vmatprep.subr.mxu0 0.0
        %753 = vmatpush1.xpose.msra.mxu0 0.0
        %754 = vmatprep.subr.mxu0 0.0
        %755 = vmatpush1.xpose.msra.mxu0 0.0
        %756 = vmatprep.subr.mxu0 0.0
        %757 = vmatpush1.xpose.msra.mxu0 0.0
        %758 = vmatprep.subr.mxu0 0.0
        %759 = vmatpush1.xpose.msra.mxu0 0.0
        %760 = vmatprep.subr.mxu0 0.0
        %761 = vmatpush1.xpose.msra.mxu0 0.0
        %762 = vmatprep.subr.mxu0 0.0
        %763 = vmatpush1.xpose.msra.mxu0 0.0
        %764 = vmatprep.subr.mxu0 0.0
        %765 = vmatpush1.xpose.msra.mxu0 0.0
        %766 = vmatprep.subr.mxu0 0.0
        %767 = vmatpush1.xpose.msra.mxu0 0.0
        %768 = vmatprep.subr.mxu0 0.0
        %769 = vmatpush1.xpose.msra.mxu0 0.0
        %770 = vmatprep.subr.mxu0 0.0
        %771 = vmatpush1.xpose.msra.mxu0 0.0
        %772 = vmatprep.subr.mxu0 0.0
        %773 = vmatpush1.xpose.msra.mxu0 0.0
        %774 = vmatprep.subr.mxu0 0.0
        %775 = vmatpush1.xpose.msra.mxu0 0.0
        %776 = vmatprep.subr.mxu0 0.0
        %777 = vmatpush1.xpose.msra.mxu0 0.0
        %778 = vmatprep.subr.mxu0 0.0
        %779 = vmatpush1.xpose.msra.mxu0 0.0
        %780 = vmatprep.subr.mxu0 0.0
        %781 = vmatpush1.xpose.msra.mxu0 0.0
        %782 = vmatprep.subr.mxu0 0.0
        %783 = vmatpush1.xpose.msra.mxu0 0.0
        %784 = vmatprep.subr.mxu0 0.0
        %785 = vmatpush1.xpose.msra.mxu0 0.0
        %786 = vmatprep.subr.mxu0 0.0
        %787 = vmatpush1.xpose.msra.mxu0 0.0
        %788 = vmatprep.mubr.f32.mxu0 0.0
        %789 = vmatmul.mubr.f32.gmra.mrb[0].mxu0 %v720
        %v790 = vpop.f32.mrb[0].mxu0
        %v791 = vadd.f32 %v385, %v790
        %v792 = vpop.f32.mrb[0].mxu0
        %793 = vdwg.mxu0
        %v794 = vsel %vm386, %v791, -inf
        %795 = vmax.xlane.f32.xlu0 %v794
        %v796 = vpop.xlane.xlu0 %795
        %v797 = vsub.f32 %v791, %v796
        %v798 = vmul.f32 %v797, 1.442695
        %v799 = vpow.pop %v798
        %v800 = vsel %vm386, %v799, 0.0
        %801 = vadd.xlane.f32.xlu0 %v800
        %v802 = vpop.xlane.xlu0 %801
        %v803 = vrcp.pop %v802
        %v804 = vmul.f32 %v799, %v803
        %s805 = scalar_lea.vmem %s380, 16 [#allocation11]
        %806 = vst.msk [vmem:[%s805] sm:$0xff] %vm386, %v804
        %807 = vrot.lane.b32.xlu0 %v384, 112
        %v808 = vpop.permute.xlu0 %807
        %v811 = vsel %vm386, %v804, 0
        %813 = vmatprep.subr.mxu0 0.0
        %814 = vmatpush1.msra.mxu0 %v808
        %815 = vmatprep.subr.mxu0 0.0
        %816 = vmatpush1.msra.mxu0 0.0
        %817 = vmatprep.subr.mxu0 0.0
        %818 = vmatpush1.msra.mxu0 0.0
        %819 = vmatprep.subr.mxu0 0.0
        %820 = vmatpush1.msra.mxu0 0.0
        %821 = vmatprep.subr.mxu0 0.0
        %822 = vmatpush1.msra.mxu0 0.0
        %823 = vmatprep.subr.mxu0 0.0
        %824 = vmatpush1.msra.mxu0 0.0
        %825 = vmatprep.subr.mxu0 0.0
        %826 = vmatpush1.msra.mxu0 0.0
        %827 = vmatprep.subr.mxu0 0.0
        %828 = vmatpush1.msra.mxu0 0.0
        %829 = vmatprep.subr.mxu0 0.0
        %830 = vmatpush1.msra.mxu0 0.0
        %831 = vmatprep.subr.mxu0 0.0
        %832 = vmatpush1.msra.mxu0 0.0
        %833 = vmatprep.subr.mxu0 0.0
        %834 = vmatpush1.msra.mxu0 0.0
        %835 = vmatprep.subr.mxu0 0.0
        %836 = vmatpush1.msra.mxu0 0.0
        %837 = vmatprep.subr.mxu0 0.0
        %838 = vmatpush1.msra.mxu0 0.0
        %839 = vmatprep.subr.mxu0 0.0
        %840 = vmatpush1.msra.mxu0 0.0
        %841 = vmatprep.subr.mxu0 0.0
        %842 = vmatpush1.msra.mxu0 0.0
        %843 = vmatprep.subr.mxu0 0.0
        %844 = vmatpush1.msra.mxu0 0.0
        %845 = vmatprep.subr.mxu0 0.0
        %846 = vmatpush1.msra.mxu0 0.0
        %847 = vmatprep.subr.mxu0 0.0
        %848 = vmatpush1.msra.mxu0 0.0
        %849 = vmatprep.subr.mxu0 0.0
        %850 = vmatpush1.msra.mxu0 0.0
        %851 = vmatprep.subr.mxu0 0.0
        %852 = vmatpush1.msra.mxu0 0.0
        %853 = vmatprep.subr.mxu0 0.0
        %854 = vmatpush1.msra.mxu0 0.0
        %855 = vmatprep.subr.mxu0 0.0
        %856 = vmatpush1.msra.mxu0 0.0
        %857 = vmatprep.subr.mxu0 0.0
        %858 = vmatpush1.msra.mxu0 0.0
        %859 = vmatprep.subr.mxu0 0.0
        %860 = vmatpush1.msra.mxu0 0.0
        %861 = vmatprep.subr.mxu0 0.0
        %862 = vmatpush1.msra.mxu0 0.0
        %863 = vmatprep.subr.mxu0 0.0
        %864 = vmatpush1.msra.mxu0 0.0
        %865 = vmatprep.subr.mxu0 0.0
        %866 = vmatpush1.msra.mxu0 0.0
        %867 = vmatprep.subr.mxu0 0.0
        %868 = vmatpush1.msra.mxu0 0.0
        %869 = vmatprep.subr.mxu0 0.0
        %870 = vmatpush1.msra.mxu0 0.0
        %871 = vmatprep.subr.mxu0 0.0
        %872 = vmatpush1.msra.mxu0 0.0
        %873 = vmatprep.subr.mxu0 0.0
        %874 = vmatpush1.msra.mxu0 0.0
        %875 = vmatprep.subr.mxu0 0.0
        %876 = vmatpush1.msra.mxu0 0.0
        %877 = vmatprep.mubr.f32.mxu0 0.0
        %878 = vmatmul.mubr.f32.gmra.mrb[0].mxu0 %v811
        %v879 = vpop.f32.mrb[0].mxu0
        %v880 = vadd.f32 0.0, %v879
        %v881 = vpop.f32.mrb[0].mxu0
        %882 = vdwg.mxu0
        %883 = vrot.lane.b32.xlu0 %v382, 104
        %v884 = vpop.permute.xlu0 %883
        %885 = vrot.lane.b32.xlu0 %v383, 104
        %v886 = vpop.permute.xlu0 %885
        %v887 = vsel %vm386, %v884, 0
        %v889 = vsel %vm386, %v886, 0
        %891 = vmatprep.subr.mxu0 0.0
        %892 = vmatpush1.xpose.msra.mxu0 %v889
        %893 = vmatprep.subr.mxu0 0.0
        %894 = vmatpush1.xpose.msra.mxu0 0.0
        %895 = vmatprep.subr.mxu0 0.0
        %896 = vmatpush1.xpose.msra.mxu0 0.0
        %897 = vmatprep.subr.mxu0 0.0
        %898 = vmatpush1.xpose.msra.mxu0 0.0
        %899 = vmatprep.subr.mxu0 0.0
        %900 = vmatpush1.xpose.msra.mxu0 0.0
        %901 = vmatprep.subr.mxu0 0.0
        %902 = vmatpush1.xpose.msra.mxu0 0.0
        %903 = vmatprep.subr.mxu0 0.0
        %904 = vmatpush1.xpose.msra.mxu0 0.0
        %905 = vmatprep.subr.mxu0 0.0
        %906 = vmatpush1.xpose.msra.mxu0 0.0
        %907 = vmatprep.subr.mxu0 0.0
        %908 = vmatpush1.xpose.msra.mxu0 0.0
        %909 = vmatprep.subr.mxu0 0.0
        %910 = vmatpush1.xpose.msra.mxu0 0.0
        %911 = vmatprep.subr.mxu0 0.0
        %912 = vmatpush1.xpose.msra.mxu0 0.0
        %913 = vmatprep.subr.mxu0 0.0
        %914 = vmatpush1.xpose.msra.mxu0 0.0
        %915 = vmatprep.subr.mxu0 0.0
        %916 = vmatpush1.xpose.msra.mxu0 0.0
        %917 = vmatprep.subr.mxu0 0.0
        %918 = vmatpush1.xpose.msra.mxu0 0.0
        %919 = vmatprep.subr.mxu0 0.0
        %920 = vmatpush1.xpose.msra.mxu0 0.0
        %921 = vmatprep.subr.mxu0 0.0
        %922 = vmatpush1.xpose.msra.mxu0 0.0
        %923 = vmatprep.subr.mxu0 0.0
        %924 = vmatpush1.xpose.msra.mxu0 0.0
        %925 = vmatprep.subr.mxu0 0.0
        %926 = vmatpush1.xpose.msra.mxu0 0.0
        %927 = vmatprep.subr.mxu0 0.0
        %928 = vmatpush1.xpose.msra.mxu0 0.0
        %929 = vmatprep.subr.mxu0 0.0
        %930 = vmatpush1.xpose.msra.mxu0 0.0
        %931 = vmatprep.subr.mxu0 0.0
        %932 = vmatpush1.xpose.msra.mxu0 0.0
        %933 = vmatprep.subr.mxu0 0.0
        %934 = vmatpush1.xpose.msra.mxu0 0.0
        %935 = vmatprep.subr.mxu0 0.0
        %936 = vmatpush1.xpose.msra.mxu0 0.0
        %937 = vmatprep.subr.mxu0 0.0
        %938 = vmatpush1.xpose.msra.mxu0 0.0
        %939 = vmatprep.subr.mxu0 0.0
        %940 = vmatpush1.xpose.msra.mxu0 0.0
        %941 = vmatprep.subr.mxu0 0.0
        %942 = vmatpush1.xpose.msra.mxu0 0.0
        %943 = vmatprep.subr.mxu0 0.0
        %944 = vmatpush1.xpose.msra.mxu0 0.0
        %945 = vmatprep.subr.mxu0 0.0
        %946 = vmatpush1.xpose.msra.mxu0 0.0
        %947 = vmatprep.subr.mxu0 0.0
        %948 = vmatpush1.xpose.msra.mxu0 0.0
        %949 = vmatprep.subr.mxu0 0.0
        %950 = vmatpush1.xpose.msra.mxu0 0.0
        %951 = vmatprep.subr.mxu0 0.0
        %952 = vmatpush1.xpose.msra.mxu0 0.0
        %953 = vmatprep.subr.mxu0 0.0
        %954 = vmatpush1.xpose.msra.mxu0 0.0
        %955 = vmatprep.mubr.f32.mxu0 0.0
        %956 = vmatmul.mubr.f32.gmra.mrb[0].mxu0 %v887
        %v957 = vpop.f32.mrb[0].mxu0
        %v958 = vadd.f32 %v385, %v957
        %v959 = vpop.f32.mrb[0].mxu0
        %960 = vdwg.mxu0
        %v961 = vsel %vm386, %v958, -inf
        %962 = vmax.xlane.f32.xlu0 %v961
        %v963 = vpop.xlane.xlu0 %962
        %v964 = vsub.f32 %v958, %v963
        %v965 = vmul.f32 %v964, 1.442695
        %v966 = vpow.pop %v965
        %v967 = vsel %vm386, %v966, 0.0
        %968 = vadd.xlane.f32.xlu0 %v967
        %v969 = vpop.xlane.xlu0 %968
        %v970 = vrcp.pop %v969
        %v971 = vmul.f32 %v966, %v970
        %s972 = scalar_lea.vmem %s380, 24 [#allocation11]
        %973 = vst.msk [vmem:[%s972] sm:$0xff] %vm386, %v971
        %974 = vrot.lane.b32.xlu0 %v384, 104
        %v975 = vpop.permute.xlu0 %974
        %v978 = vsel %vm386, %v971, 0
        %980 = vmatprep.subr.mxu0 0.0
        %981 = vmatpush1.msra.mxu0 %v975
        %982 = vmatprep.subr.mxu0 0.0
        %983 = vmatpush1.msra.mxu0 0.0
        %984 = vmatprep.subr.mxu0 0.0
        %985 = vmatpush1.msra.mxu0 0.0
        %986 = vmatprep.subr.mxu0 0.0
        %987 = vmatpush1.msra.mxu0 0.0
        %988 = vmatprep.subr.mxu0 0.0
        %989 = vmatpush1.msra.mxu0 0.0
        %990 = vmatprep.subr.mxu0 0.0
        %991 = vmatpush1.msra.mxu0 0.0
        %992 = vmatprep.subr.mxu0 0.0
        %993 = vmatpush1.msra.mxu0 0.0
        %994 = vmatprep.subr.mxu0 0.0
        %995 = vmatpush1.msra.mxu0 0.0
        %996 = vmatprep.subr.mxu0 0.0
        %997 = vmatpush1.msra.mxu0 0.0
        %998 = vmatprep.subr.mxu0 0.0
        %999 = vmatpush1.msra.mxu0 0.0
        %1000 = vmatprep.subr.mxu0 0.0
        %1001 = vmatpush1.msra.mxu0 0.0
        %1002 = vmatprep.subr.mxu0 0.0
        %1003 = vmatpush1.msra.mxu0 0.0
        %1004 = vmatprep.subr.mxu0 0.0
        %1005 = vmatpush1.msra.mxu0 0.0
        %1006 = vmatprep.subr.mxu0 0.0
        %1007 = vmatpush1.msra.mxu0 0.0
        %1008 = vmatprep.subr.mxu0 0.0
        %1009 = vmatpush1.msra.mxu0 0.0
        %1010 = vmatprep.subr.mxu0 0.0
        %1011 = vmatpush1.msra.mxu0 0.0
        %1012 = vmatprep.subr.mxu0 0.0
        %1013 = vmatpush1.msra.mxu0 0.0
        %1014 = vmatprep.subr.mxu0 0.0
        %1015 = vmatpush1.msra.mxu0 0.0
        %1016 = vmatprep.subr.mxu0 0.0
        %1017 = vmatpush1.msra.mxu0 0.0
        %1018 = vmatprep.subr.mxu0 0.0
        %1019 = vmatpush1.msra.mxu0 0.0
        %1020 = vmatprep.subr.mxu0 0.0
        %1021 = vmatpush1.msra.mxu0 0.0
        %1022 = vmatprep.subr.mxu0 0.0
        %1023 = vmatpush1.msra.mxu0 0.0
        %1024 = vmatprep.subr.mxu0 0.0
        %1025 = vmatpush1.msra.mxu0 0.0
        %1026 = vmatprep.subr.mxu0 0.0
        %1027 = vmatpush1.msra.mxu0 0.0
        %1028 = vmatprep.subr.mxu0 0.0
        %1029 = vmatpush1.msra.mxu0 0.0
        %1030 = vmatprep.subr.mxu0 0.0
        %1031 = vmatpush1.msra.mxu0 0.0
        %1032 = vmatprep.subr.mxu0 0.0
        %1033 = vmatpush1.msra.mxu0 0.0
        %1034 = vmatprep.subr.mxu0 0.0
        %1035 = vmatpush1.msra.mxu0 0.0
        %1036 = vmatprep.subr.mxu0 0.0
        %1037 = vmatpush1.msra.mxu0 0.0
        %1038 = vmatprep.subr.mxu0 0.0
        %1039 = vmatpush1.msra.mxu0 0.0
        %1040 = vmatprep.subr.mxu0 0.0
        %1041 = vmatpush1.msra.mxu0 0.0
        %1042 = vmatprep.subr.mxu0 0.0
        %1043 = vmatpush1.msra.mxu0 0.0
        %1044 = vmatprep.mubr.f32.mxu0 0.0
        %1045 = vmatmul.mubr.f32.gmra.mrb[0].mxu0 %v978
        %v1046 = vpop.f32.mrb[0].mxu0
        %v1047 = vadd.f32 0.0, %v1046
        %v1048 = vpop.f32.mrb[0].mxu0
        %1049 = vdwg.mxu0
        %1051 = vrot.lane.b32.xlu0 %v713, 8
        %v1052 = vpop.permute.xlu0 %1051
        %1055 = vrot.lane.b32.xlu0 %v880, 16
        %v1056 = vpop.permute.xlu0 %1055
        %1059 = vrot.lane.b32.xlu0 %v1047, 24
        %v1060 = vpop.permute.xlu0 %1059
        %v1062 = vsel %vm386, %v545, %v1052
        %vm1063 = vcmask 130048
        %v1064 = vsel %vm1063, %v1062, %v1056
        %vm1065 = vcmask 195584
        %v1066 = vsel %vm1065, %v1064, %v1060
        %vm1067 = vcmask 261120
        %1068 = vst.msk [vmem:[%s373] sm:$0xff] %vm1067, %v1066
        %s1069 = sand.u32 %s162, 1
        %s1070 = scalar_lea.sflag [#allocation4], %s1069
        %s1071 = sand.u32 %s162, 1
        %s1072 = smul.addr %s1071, 8
        %s1073 = scalar_lea.vmem [#allocation10], %s1072
        %s1074 = sand.u32 %s190, 1
        %s1075 = scalar_lea.sflag [#allocation12], %s1074
        %s1076 = sand.u32 %s190, 1
        %s1077 = smul.addr %s1076, 32
        %s1078 = scalar_lea.vmem [#allocation11], %s1077
        // Predicated region
        $region53: #{tpu_custom_call.1} parent=35 // pred_check
          %p1079 = pneg %p172
        $region54: #{tpu_custom_call.1} parent=35 // pred_check_branch
          %1081 = sbr.rel (%p1079) target = $region56
        $region55: #{tpu_custom_call.1} parent=35 // pred_region
          %s1083 = ssub.s32 128, 128
          %1084 = vsyncadd %s1070, %s1083
          %s1085 = sadd.s32 %s37, %s36
          %s1086 = smul.addr %s1085, 128
          %s1087 = scalar_lea.hbm %s4, %s1086
          %s1089 = sshll.u32 %s1073, 4
          %s1090 = int_to_ptr.vmem [resolvable:$true] %s1089
          %1092 = dma.vmem_to_hbm [thread:$0]  %s1090, 128, %s1087, %s1070
        $region56: #{tpu_custom_call.1} parent=35 // pred_fallthru
          _
        // Predicated region
        $region57: #{tpu_custom_call.1} parent=35 // pred_check
          %p1093 = pneg %p200
        $region58: #{tpu_custom_call.1} parent=35 // pred_check_branch
          %1095 = sbr.rel (%p1093) target = $region60
        $region59: #{tpu_custom_call.1} parent=35 // pred_region
          %s1097 = ssub.s32 512, 512
          %1098 = vsyncadd %s1075, %s1097
          %s1099 = smul.addr %s36, 4
          %s1100 = sadd.s32 %s37, %s1099
          %s1101 = smul.addr %s1100, 128
          %s1102 = scalar_lea.hbm %s5, %s1101
          %s1103 = sshll.u32 %s1078, 4
          %s1104 = int_to_ptr.vmem [resolvable:$true] %s1103
          %1109 = dma.vmem_to_hbm [thread:$0]  %s1104, 512, %s1102, %s1075, 128, 128, 8
        $region60: #{tpu_custom_call.1} parent=35 // pred_fallthru
          _
      $region36: #{tpu_custom_call.1} parent=5 // pred_fallthru
        _
      %p1110 = scmp.le.s32.totalorder 2, %s27
      // Predicated region
      $region61: #{tpu_custom_call.1} parent=5 // pred_check
        %p1111 = pneg %p1110
      $region62: #{tpu_custom_call.1} parent=5 // pred_check_branch
        %1113 = sbr.rel (%p1111) target = $region64
      $region63: #{tpu_custom_call.1} parent=5 // pred_region
        %s1114 = ssub.s32 %s27, 2
        // Predicated region
        $region65: #{tpu_custom_call.1} parent=63 // pred_check
          %p1115 = pneg %p178
        $region66: #{tpu_custom_call.1} parent=63 // pred_check_branch
          %1117 = sbr.rel (%p1115) target = $region68
        $region67: #{tpu_custom_call.1} parent=63 // pred_region
          %s1118 = sand.u32 %s163, 1
          %s1119 = scalar_lea.sflag [#allocation4], %s1118
          %s1120 = sand.u32 %s163, 1
          %s1121 = smul.addr %s1120, 8
          %s1122 = scalar_lea.vmem [#allocation10], %s1121
          %1123 = dma.done %s1119, 128
        $region68: #{tpu_custom_call.1} parent=63 // pred_fallthru
          _
        // Predicated region
        $region69: #{tpu_custom_call.1} parent=63 // pred_check
          %p1124 = pneg %p206
        $region70: #{tpu_custom_call.1} parent=63 // pred_check_branch
          %1126 = sbr.rel (%p1124) target = $region72
        $region71: #{tpu_custom_call.1} parent=63 // pred_region
          %s1127 = sand.u32 %s191, 1
          %s1128 = scalar_lea.sflag [#allocation12], %s1127
          %s1129 = sand.u32 %s191, 1
          %s1130 = smul.addr %s1129, 32
          %s1131 = scalar_lea.vmem [#allocation11], %s1130
          %1132 = dma.done %s1128, 512
        $region72: #{tpu_custom_call.1} parent=63 // pred_fallthru
          _
      $region64: #{tpu_custom_call.1} parent=5 // pred_fallthru
        _
    $region6: #{tpu_custom_call.1} parent=1 // loop_footer
      %s31 = sadd.s32 1, %s27
    $region7: #{tpu_custom_call.1} parent=1 // loop_footer_branch
      %26 = sbr.rel target = $region3
    $region8: #{tpu_custom_call.1} parent=1 // loop_exit
      _
    %1133 = vsyncpa [#allocation3], 1
    %s1134 = scalar_lea.sflag [#allocation3], 1
    %1135 = vsyncpa %s1134, 1
    %1136 = vsyncpa [#allocation6], 1
    %s1137 = scalar_lea.sflag [#allocation6], 1
    %1138 = vsyncpa %s1137, 1
    %1139 = vsyncpa [#allocation9], 1
    %s1140 = scalar_lea.sflag [#allocation9], 1
    %1141 = vsyncpa %s1140, 1
    %1142 = vsyncpa [#allocation4], 1
    %s1143 = scalar_lea.sflag [#allocation4], 1
    %1144 = vsyncpa %s1143, 1
    %1145 = vsyncpa [#allocation12], 1
    %s1146 = scalar_lea.sflag [#allocation12], 1
    %1147 = vsyncpa %s1146, 1

</llo_original>
